<compile_context>
chip_gen: v5e
topology: v5e:2x2
jax: 0.10.0
libtpu: 0.0.40
codegen_flags: <defaults>
</compile_context>

<pallas_src>
import functools

import jax
import jax.numpy as jnp
from jax import lax
from jax.experimental import pallas as pl
from jax.experimental.pallas import tpu as pltpu


def _round_up(v, m):
    return (v + m - 1) // m * m


# --------------------------- fused kernel ------------------------------------
def _conv_block_fused_kernel(x_ref, w_ref, b_ref, g_ref, bt_ref, o_ref,
                             slab_ref, *, nb, num_taps, kw, Wp, Wo, L, Lp,
                             n_total, count, negative_slope, eps):
    """Fused Conv2d + bias + LeakyReLU + (eval-mode Dropout2d) + BatchNorm2d.

    Grid: one step per batch block of `nb` images (axis is "arbitrary").
    x_ref    : (nb, C_in_p, Lx)          f32, padded image block, spatial flat
    w_ref    : (C_out, kh*kw*C_in_p)     bf16, tap-stacked conv weight
    b_ref    : (C_out, 1)                f32 conv bias
    g_ref    : (C_out, 1)                f32 BN gamma
    bt_ref   : (C_out, 1)                f32 BN beta
    o_ref    : (N, C_out, Lp)            f32, VMEM-resident across the grid;
                                         pre-BN until the last-step epilogue
    slab_ref : (kh*kw*C_in_p, nb*Lp)     bf16 VMEM scratch (stacked-K slab)
    """
    blk = pl.program_id(0)
    c_in_p = x_ref.shape[1]

    # ---- stacked-K slab: one bf16 cast + nb*kh*kw lane-shifted copies -------
    xb = x_ref[...].astype(jnp.bfloat16)                   # in-kernel f32->bf16
    for i in range(nb):
        for t in range(num_taps):
            ki, kj = divmod(t, kw)
            off = ki * Wp + kj
            slab_ref[t * c_in_p:(t + 1) * c_in_p, i * Lp:(i + 1) * Lp] = \
                xb[i, :, off:off + Lp]

    # ---- one K-stacked MXU matmul for the whole batch block -----------------
    res = jnp.dot(w_ref[...], slab_ref[...],
                  preferred_element_type=jnp.float32)      # (C_out, nb*Lp) f32
    res = res + b_ref[...]                                 # conv bias
    res = jnp.where(res >= 0, res, negative_slope * res)   # LeakyReLU
    # TODO(synk): Dropout2d(p=0.04) is stochastic in train(); eval-mode
    # identity is implemented here (deterministic forward).

    for i in range(nb):
        o_ref[blk * nb + i] = res[:, i * Lp:(i + 1) * Lp]

    # ---- last-step epilogue: two-pass BatchNorm over the resident output ----
    @pl.when(blk == pl.num_programs(0) - 1)
    def _():
        col = lax.broadcasted_iota(jnp.int32, (1, Lp), 1)
        mask = jnp.logical_and(col % Wp < Wo, col < L).astype(jnp.float32)
        inv_count = 1.0 / count

        s = jnp.zeros((o_ref.shape[1], 1), jnp.float32)
        for n in range(n_total):                           # static unroll
            s = s + jnp.sum(o_ref[n] * mask, axis=1, keepdims=True)
        mean = s * inv_count

        v = jnp.zeros((o_ref.shape[1], 1), jnp.float32)
        for n in range(n_total):
            d = (o_ref[n] - mean) * mask
            v = v + jnp.sum(d * d, axis=1, keepdims=True)
        var = v * inv_count                                # biased (training BN)

        scale = g_ref[...] * lax.rsqrt(var + eps)
        shift = bt_ref[...] - mean * scale
        for n in range(n_total):
            o_ref[n] = o_ref[n] * scale + shift


# --------------------------- wrapper ------------------------------------------
def conv_block_forward(x, weight, bias, gamma, beta, *, stride=1, padding=0,
                       negative_slope=0.2, eps=1e-5):
    """Forward pass of Conv_block (non-transpose path, training-mode BN).

    x: (N, C_in, H, W) f32.  weight: (C_out, C_in, kh, kw) (PyTorch layout).
    """
    if stride != 1:
        # TODO(synk): strided conv needs a strided slab gather; not needed for
        # the csvae Conv_block configuration exercised here.
        raise NotImplementedError("conv_block_forward: only stride=1 supported")

    N, C_in, H, W = x.shape
    C_out, _, kh, kw = weight.shape
    Hp, Wp = H + 2 * padding, W + 2 * padding
    Ho, Wo = Hp - kh + 1, Wp - kw + 1
    L = Ho * Wp                          # flat conv-slab columns per image
    Lp = _round_up(L, 128)               # lane-dense block width
    C_in_p = _round_up(C_in, 16)         # bf16 sublane tile
    Ktot = kh * kw * C_in_p
    off_max = (kh - 1) * Wp + (kw - 1)
    Hrows = -(-(off_max + Lp) // Wp)     # rows so every tap slice is in-bounds
    Lx = Hrows * Wp

    # ---- single pad pass: channel pad + spatial pad + bottom fill rows ------
    xp = jnp.pad(x, ((0, 0), (0, C_in_p - C_in),
                     (padding, Hrows - H - padding), (padding, padding)))
    xflat = xp.reshape(N, C_in_p, Lx)    # stays f32; bf16 cast happens in-kernel

    # ---- parameter prep (tiny; ideally hoisted/cached by the caller) --------
    wp = jnp.pad(weight, ((0, 0), (0, C_in_p - C_in), (0, 0), (0, 0)))
    w_stack = wp.transpose(0, 2, 3, 1).reshape(C_out, Ktot).astype(jnp.bfloat16)
    b2 = bias.reshape(C_out, 1).astype(jnp.float32)
    g2 = gamma.reshape(C_out, 1).astype(jnp.float32)
    bt2 = beta.reshape(C_out, 1).astype(jnp.float32)

    # ---- batch block size: largest divisor of N within the VMEM budget ------
    out_bytes = N * C_out * Lp * 4
    budget = 24 * 1024 * 1024            # headroom under v7x's 64 MiB VMEM
    nb = 1
    for cand in range(1, min(N, 8) + 1):
        if N % cand:
            continue
        foot = 2 * cand * C_in_p * Lx * 4 + Ktot * cand * Lp * 2 + out_bytes
        if foot <= budget:
            nb = cand
    n_blocks = N // nb
    # TODO(synk): if the full (N, C_out, Lp) activation no longer fits VMEM,
    # fall back to a two-pass (stats pass + affine pass) split over the batch.

    count = N * Ho * Wo
    kernel = functools.partial(
        _conv_block_fused_kernel, nb=nb, num_taps=kh * kw, kw=kw, Wp=Wp, Wo=Wo,
        L=L, Lp=Lp, n_total=N, count=count,
        negative_slope=negative_slope, eps=eps)

    cost = pl.CostEstimate(
        flops=2 * N * C_out * Ktot * Lp + 10 * N * C_out * Lp,
        transcendentals=C_out,
        bytes_accessed=(N * C_in_p * Lx * 4 + C_out * Ktot * 2
                        + 3 * C_out * 4 + N * C_out * Lp * 4))

    out_flat = pl.pallas_call(
        kernel,
        out_shape=jax.ShapeDtypeStruct((N, C_out, Lp), jnp.float32),
        grid=(n_blocks,),
        in_specs=[
            pl.BlockSpec((nb, C_in_p, Lx), lambda b: (b, 0, 0)),   # image block
            pl.BlockSpec((C_out, Ktot), lambda b: (0, 0)),         # weights
            pl.BlockSpec((C_out, 1), lambda b: (0, 0)),            # bias
            pl.BlockSpec((C_out, 1), lambda b: (0, 0)),            # gamma
            pl.BlockSpec((C_out, 1), lambda b: (0, 0)),            # beta
        ],
        out_specs=pl.BlockSpec((N, C_out, Lp), lambda b: (0, 0, 0)),  # resident
        scratch_shapes=[pltpu.VMEM((Ktot, nb * Lp), jnp.bfloat16)],
        compiler_params=pltpu.CompilerParams(
            dimension_semantics=("arbitrary",),
            vmem_limit_bytes=32 * 1024 * 1024),
        cost_estimate=cost,
    )(xflat, w_stack, b2, g2, bt2)

    # Compact the Wp-strided rows into the NCHW result (one cheap slice pass;
    # the layout is already (N, C, H, W)-ordered, no transpose needed).
    return out_flat[:, :, :L].reshape(N, C_out, Ho, Wp)[:, :, :, :Wo]


# --------------------------- reference & test ---------------------------------
def _reference(x, weight, bias, gamma, beta, *, stride, padding,
               negative_slope, eps):
    y = lax.conv_general_dilated(
        x, weight, (stride, stride),
        [(padding, padding), (padding, padding)],
        dimension_numbers=("NCHW", "OIHW", "NCHW"),
        precision=lax.Precision.HIGHEST)
    y = y + bias.reshape(1, -1, 1, 1)
    y = jnp.where(y >= 0, y, negative_slope * y)
    mean = y.mean(axis=(0, 2, 3), keepdims=True)
    var = ((y - mean) ** 2).mean(axis=(0, 2, 3), keepdims=True)
    return ((y - mean) / jnp.sqrt(var + eps)) * gamma.reshape(1, -1, 1, 1) \
        + beta.reshape(1, -1, 1, 1)


if __name__ == "__main__":
    # num_features = out_channels = 8, in_channels = 4, kernel_size = 3,
    # stride = 1, padding = 1, negative_slope = 0.2, transpose = False.
    N, C_in, H, W = 2, 4, 16, 16
    C_out, k = 8, 3
    stride, padding = 1, 1
    negative_slope, eps = 0.2, 1e-5

    key = jax.random.PRNGKey(0)
    kx, kwkey, kb = jax.random.split(key, 3)
    x = jax.random.normal(kx, (N, C_in, H, W), dtype=jnp.float32)
    weight = 0.1 * jax.random.normal(kwkey, (C_out, C_in, k, k), dtype=jnp.float32)
    bias = 0.1 * jax.random.normal(kb, (C_out,), dtype=jnp.float32)
    gamma = jnp.ones((C_out,), jnp.float32)    # BatchNorm2d default init
    beta = jnp.zeros((C_out,), jnp.float32)

    fwd = jax.jit(functools.partial(conv_block_forward, stride=stride,
                                    padding=padding,
                                    negative_slope=negative_slope, eps=eps))
    out = jax.block_until_ready(fwd(x, weight, bias, gamma, beta))
    assert out.shape == (N, C_out, H, W)

    # Tight check against a reference whose conv inputs are quantized to bf16
    # exactly like the kernel's MXU operands (accumulation is f32 in both).
    xq = x.astype(jnp.bfloat16).astype(jnp.float32)
    wq = weight.astype(jnp.bfloat16).astype(jnp.float32)
    ref_q = _reference(xq, wq, bias, gamma, beta, stride=stride, padding=padding,
                       negative_slope=negative_slope, eps=eps)
    assert jnp.allclose(out, ref_q, atol=1e-3, rtol=1e-3), \
        float(jnp.max(jnp.abs(out - ref_q)))

    # Looser sanity check against the pure-f32 module semantics (the bf16 MXU
    # operands introduce ~1e-2 absolute error on the normalized output).
    ref = _reference(x, weight, bias, gamma, beta, stride=stride, padding=padding,
                     negative_slope=negative_slope, eps=eps)
    assert jnp.allclose(out, ref, atol=5e-2, rtol=5e-2), \
        float(jnp.max(jnp.abs(out - ref)))

    print("KERNEL_OK")
</pallas_src>

<mosaic_0001>
module attributes {stable_mosaic.version = 11 : i64} {
  func.func @_conv_block_fused_kernel(%arg0: i32, %arg1: memref<2x16x432xf32, #tpu.memory_space<vmem>>, %arg2: memref<8x144xbf16, #tpu.memory_space<vmem>>, %arg3: memref<8x1xf32, #tpu.memory_space<vmem>>, %arg4: memref<8x1xf32, #tpu.memory_space<vmem>>, %arg5: memref<8x1xf32, #tpu.memory_space<vmem>>, %arg6: memref<2x8x384xf32, #tpu.memory_space<vmem>>, %arg7: memref<144x768xbf16, #tpu.memory_space<vmem>>) attributes {dimension_semantics = [#tpu.dimension_semantics<arbitrary>], iteration_bounds = array<i64: 1>, scalar_prefetch = 0 : i64, scratch_operands = 1 : i64, tpu.core_type = #tpu.core_type<tc>, window_params = [{transform_indices = @transform_0, window_bounds = array<i64: 2, 16, 432>}, {pipeline_mode = #tpu.pipeline_mode<synchronous>, transform_indices = @transform_1, window_bounds = array<i64: 8, 144>}, {pipeline_mode = #tpu.pipeline_mode<synchronous>, transform_indices = @transform_2, window_bounds = array<i64: 8, 1>}, {pipeline_mode = #tpu.pipeline_mode<synchronous>, transform_indices = @transform_3, window_bounds = array<i64: 8, 1>}, {pipeline_mode = #tpu.pipeline_mode<synchronous>, transform_indices = @transform_4, window_bounds = array<i64: 8, 1>}, {pipeline_mode = #tpu.pipeline_mode<synchronous>, transform_indices = @transform_5, window_bounds = array<i64: 2, 8, 384>}]} {
    %c0 = arith.constant 0 : index
    %c0_0 = arith.constant 0 : index
    %c0_1 = arith.constant 0 : index
    %0 = vector.load %arg1[%c0, %c0_0, %c0_1] : memref<2x16x432xf32, #tpu.memory_space<vmem>>, vector<2x16x432xf32>
    %1 = arith.truncf %0 : vector<2x16x432xf32> to vector<2x16x432xbf16>
    %2 = vector.extract_strided_slice %1 {offsets = [0, 0, 0], sizes = [1, 16, 384], strides = [1, 1, 1]} : vector<2x16x432xbf16> to vector<1x16x384xbf16>
    %3 = vector.shape_cast %2 : vector<1x16x384xbf16> to vector<16x384xbf16>
    %c0_2 = arith.constant 0 : index
    %c0_3 = arith.constant 0 : index
    %4 = vector.load %arg7[%c0_2, %c0_3] : memref<144x768xbf16, #tpu.memory_space<vmem>>, vector<16x384xbf16>
    tpu.vector_store %arg7[%c0_2, %c0_3], %3 {strides = array<i32>} : memref<144x768xbf16, #tpu.memory_space<vmem>>, vector<16x384xbf16>,
    %5 = vector.extract_strided_slice %1 {offsets = [0, 0, 1], sizes = [1, 16, 384], strides = [1, 1, 1]} : vector<2x16x432xbf16> to vector<1x16x384xbf16>
    %6 = vector.shape_cast %5 : vector<1x16x384xbf16> to vector<16x384xbf16>
    %c16 = arith.constant 16 : index
    %c0_4 = arith.constant 0 : index
    %7 = vector.load %arg7[%c16, %c0_4] : memref<144x768xbf16, #tpu.memory_space<vmem>>, vector<16x384xbf16>
    tpu.vector_store %arg7[%c16, %c0_4], %6 {strides = array<i32>} : memref<144x768xbf16, #tpu.memory_space<vmem>>, vector<16x384xbf16>,
    %8 = vector.extract_strided_slice %1 {offsets = [0, 0, 2], sizes = [1, 16, 384], strides = [1, 1, 1]} : vector<2x16x432xbf16> to vector<1x16x384xbf16>
    %9 = vector.shape_cast %8 : vector<1x16x384xbf16> to vector<16x384xbf16>
    %c32 = arith.constant 32 : index
    %c0_5 = arith.constant 0 : index
    %10 = vector.load %arg7[%c32, %c0_5] : memref<144x768xbf16, #tpu.memory_space<vmem>>, vector<16x384xbf16>
    tpu.vector_store %arg7[%c32, %c0_5], %9 {strides = array<i32>} : memref<144x768xbf16, #tpu.memory_space<vmem>>, vector<16x384xbf16>,
    %11 = vector.extract_strided_slice %1 {offsets = [0, 0, 18], sizes = [1, 16, 384], strides = [1, 1, 1]} : vector<2x16x432xbf16> to vector<1x16x384xbf16>
    %12 = vector.shape_cast %11 : vector<1x16x384xbf16> to vector<16x384xbf16>
    %c48 = arith.constant 48 : index
    %c0_6 = arith.constant 0 : index
    %13 = vector.load %arg7[%c48, %c0_6] : memref<144x768xbf16, #tpu.memory_space<vmem>>, vector<16x384xbf16>
    tpu.vector_store %arg7[%c48, %c0_6], %12 {strides = array<i32>} : memref<144x768xbf16, #tpu.memory_space<vmem>>, vector<16x384xbf16>,
    %14 = vector.extract_strided_slice %1 {offsets = [0, 0, 19], sizes = [1, 16, 384], strides = [1, 1, 1]} : vector<2x16x432xbf16> to vector<1x16x384xbf16>
    %15 = vector.shape_cast %14 : vector<1x16x384xbf16> to vector<16x384xbf16>
    %c64 = arith.constant 64 : index
    %c0_7 = arith.constant 0 : index
    %16 = vector.load %arg7[%c64, %c0_7] : memref<144x768xbf16, #tpu.memory_space<vmem>>, vector<16x384xbf16>
    tpu.vector_store %arg7[%c64, %c0_7], %15 {strides = array<i32>} : memref<144x768xbf16, #tpu.memory_space<vmem>>, vector<16x384xbf16>,
    %17 = vector.extract_strided_slice %1 {offsets = [0, 0, 20], sizes = [1, 16, 384], strides = [1, 1, 1]} : vector<2x16x432xbf16> to vector<1x16x384xbf16>
    %18 = vector.shape_cast %17 : vector<1x16x384xbf16> to vector<16x384xbf16>
    %c80 = arith.constant 80 : index
    %c0_8 = arith.constant 0 : index
    %19 = vector.load %arg7[%c80, %c0_8] : memref<144x768xbf16, #tpu.memory_space<vmem>>, vector<16x384xbf16>
    tpu.vector_store %arg7[%c80, %c0_8], %18 {strides = array<i32>} : memref<144x768xbf16, #tpu.memory_space<vmem>>, vector<16x384xbf16>,
    %20 = vector.extract_strided_slice %1 {offsets = [0, 0, 36], sizes = [1, 16, 384], strides = [1, 1, 1]} : vector<2x16x432xbf16> to vector<1x16x384xbf16>
    %21 = vector.shape_cast %20 : vector<1x16x384xbf16> to vector<16x384xbf16>
    %c96 = arith.constant 96 : index
    %c0_9 = arith.constant 0 : index
    %22 = vector.load %arg7[%c96, %c0_9] : memref<144x768xbf16, #tpu.memory_space<vmem>>, vector<16x384xbf16>
    tpu.vector_store %arg7[%c96, %c0_9], %21 {strides = array<i32>} : memref<144x768xbf16, #tpu.memory_space<vmem>>, vector<16x384xbf16>,
    %23 = vector.extract_strided_slice %1 {offsets = [0, 0, 37], sizes = [1, 16, 384], strides = [1, 1, 1]} : vector<2x16x432xbf16> to vector<1x16x384xbf16>
    %24 = vector.shape_cast %23 : vector<1x16x384xbf16> to vector<16x384xbf16>
    %c112 = arith.constant 112 : index
    %c0_10 = arith.constant 0 : index
    %25 = vector.load %arg7[%c112, %c0_10] : memref<144x768xbf16, #tpu.memory_space<vmem>>, vector<16x384xbf16>
    tpu.vector_store %arg7[%c112, %c0_10], %24 {strides = array<i32>} : memref<144x768xbf16, #tpu.memory_space<vmem>>, vector<16x384xbf16>,
    %26 = vector.extract_strided_slice %1 {offsets = [0, 0, 38], sizes = [1, 16, 384], strides = [1, 1, 1]} : vector<2x16x432xbf16> to vector<1x16x384xbf16>
    %27 = vector.shape_cast %26 : vector<1x16x384xbf16> to vector<16x384xbf16>
    %c128 = arith.constant 128 : index
    %c0_11 = arith.constant 0 : index
    %28 = vector.load %arg7[%c128, %c0_11] : memref<144x768xbf16, #tpu.memory_space<vmem>>, vector<16x384xbf16>
    tpu.vector_store %arg7[%c128, %c0_11], %27 {strides = array<i32>} : memref<144x768xbf16, #tpu.memory_space<vmem>>, vector<16x384xbf16>,
    %29 = vector.extract_strided_slice %1 {offsets = [1, 0, 0], sizes = [1, 16, 384], strides = [1, 1, 1]} : vector<2x16x432xbf16> to vector<1x16x384xbf16>
    %30 = vector.shape_cast %29 : vector<1x16x384xbf16> to vector<16x384xbf16>
    %c0_12 = arith.constant 0 : index
    %c384 = arith.constant 384 : index
    %31 = vector.load %arg7[%c0_12, %c384] : memref<144x768xbf16, #tpu.memory_space<vmem>>, vector<16x384xbf16>
    tpu.vector_store %arg7[%c0_12, %c384], %30 {strides = array<i32>} : memref<144x768xbf16, #tpu.memory_space<vmem>>, vector<16x384xbf16>,
    %32 = vector.extract_strided_slice %1 {offsets = [1, 0, 1], sizes = [1, 16, 384], strides = [1, 1, 1]} : vector<2x16x432xbf16> to vector<1x16x384xbf16>
    %33 = vector.shape_cast %32 : vector<1x16x384xbf16> to vector<16x384xbf16>
    %c16_13 = arith.constant 16 : index
    %c384_14 = arith.constant 384 : index
    %34 = vector.load %arg7[%c16_13, %c384_14] : memref<144x768xbf16, #tpu.memory_space<vmem>>, vector<16x384xbf16>
    tpu.vector_store %arg7[%c16_13, %c384_14], %33 {strides = array<i32>} : memref<144x768xbf16, #tpu.memory_space<vmem>>, vector<16x384xbf16>,
    %35 = vector.extract_strided_slice %1 {offsets = [1, 0, 2], sizes = [1, 16, 384], strides = [1, 1, 1]} : vector<2x16x432xbf16> to vector<1x16x384xbf16>
    %36 = vector.shape_cast %35 : vector<1x16x384xbf16> to vector<16x384xbf16>
    %c32_15 = arith.constant 32 : index
    %c384_16 = arith.constant 384 : index
    %37 = vector.load %arg7[%c32_15, %c384_16] : memref<144x768xbf16, #tpu.memory_space<vmem>>, vector<16x384xbf16>
    tpu.vector_store %arg7[%c32_15, %c384_16], %36 {strides = array<i32>} : memref<144x768xbf16, #tpu.memory_space<vmem>>, vector<16x384xbf16>,
    %38 = vector.extract_strided_slice %1 {offsets = [1, 0, 18], sizes = [1, 16, 384], strides = [1, 1, 1]} : vector<2x16x432xbf16> to vector<1x16x384xbf16>
    %39 = vector.shape_cast %38 : vector<1x16x384xbf16> to vector<16x384xbf16>
    %c48_17 = arith.constant 48 : index
    %c384_18 = arith.constant 384 : index
    %40 = vector.load %arg7[%c48_17, %c384_18] : memref<144x768xbf16, #tpu.memory_space<vmem>>, vector<16x384xbf16>
    tpu.vector_store %arg7[%c48_17, %c384_18], %39 {strides = array<i32>} : memref<144x768xbf16, #tpu.memory_space<vmem>>, vector<16x384xbf16>,
    %41 = vector.extract_strided_slice %1 {offsets = [1, 0, 19], sizes = [1, 16, 384], strides = [1, 1, 1]} : vector<2x16x432xbf16> to vector<1x16x384xbf16>
    %42 = vector.shape_cast %41 : vector<1x16x384xbf16> to vector<16x384xbf16>
    %c64_19 = arith.constant 64 : index
    %c384_20 = arith.constant 384 : index
    %43 = vector.load %arg7[%c64_19, %c384_20] : memref<144x768xbf16, #tpu.memory_space<vmem>>, vector<16x384xbf16>
    tpu.vector_store %arg7[%c64_19, %c384_20], %42 {strides = array<i32>} : memref<144x768xbf16, #tpu.memory_space<vmem>>, vector<16x384xbf16>,
    %44 = vector.extract_strided_slice %1 {offsets = [1, 0, 20], sizes = [1, 16, 384], strides = [1, 1, 1]} : vector<2x16x432xbf16> to vector<1x16x384xbf16>
    %45 = vector.shape_cast %44 : vector<1x16x384xbf16> to vector<16x384xbf16>
    %c80_21 = arith.constant 80 : index
    %c384_22 = arith.constant 384 : index
    %46 = vector.load %arg7[%c80_21, %c384_22] : memref<144x768xbf16, #tpu.memory_space<vmem>>, vector<16x384xbf16>
    tpu.vector_store %arg7[%c80_21, %c384_22], %45 {strides = array<i32>} : memref<144x768xbf16, #tpu.memory_space<vmem>>, vector<16x384xbf16>,
    %47 = vector.extract_strided_slice %1 {offsets = [1, 0, 36], sizes = [1, 16, 384], strides = [1, 1, 1]} : vector<2x16x432xbf16> to vector<1x16x384xbf16>
    %48 = vector.shape_cast %47 : vector<1x16x384xbf16> to vector<16x384xbf16>
    %c96_23 = arith.constant 96 : index
    %c384_24 = arith.constant 384 : index
    %49 = vector.load %arg7[%c96_23, %c384_24] : memref<144x768xbf16, #tpu.memory_space<vmem>>, vector<16x384xbf16>
    tpu.vector_store %arg7[%c96_23, %c384_24], %48 {strides = array<i32>} : memref<144x768xbf16, #tpu.memory_space<vmem>>, vector<16x384xbf16>,
    %50 = vector.extract_strided_slice %1 {offsets = [1, 0, 37], sizes = [1, 16, 384], strides = [1, 1, 1]} : vector<2x16x432xbf16> to vector<1x16x384xbf16>
    %51 = vector.shape_cast %50 : vector<1x16x384xbf16> to vector<16x384xbf16>
    %c112_25 = arith.constant 112 : index
    %c384_26 = arith.constant 384 : index
    %52 = vector.load %arg7[%c112_25, %c384_26] : memref<144x768xbf16, #tpu.memory_space<vmem>>, vector<16x384xbf16>
    tpu.vector_store %arg7[%c112_25, %c384_26], %51 {strides = array<i32>} : memref<144x768xbf16, #tpu.memory_space<vmem>>, vector<16x384xbf16>,
    %53 = vector.extract_strided_slice %1 {offsets = [1, 0, 38], sizes = [1, 16, 384], strides = [1, 1, 1]} : vector<2x16x432xbf16> to vector<1x16x384xbf16>
    %54 = vector.shape_cast %53 : vector<1x16x384xbf16> to vector<16x384xbf16>
    %c128_27 = arith.constant 128 : index
    %c384_28 = arith.constant 384 : index
    %55 = vector.load %arg7[%c128_27, %c384_28] : memref<144x768xbf16, #tpu.memory_space<vmem>>, vector<16x384xbf16>
    tpu.vector_store %arg7[%c128_27, %c384_28], %54 {strides = array<i32>} : memref<144x768xbf16, #tpu.memory_space<vmem>>, vector<16x384xbf16>,
    %c0_29 = arith.constant 0 : index
    %c0_30 = arith.constant 0 : index
    %56 = vector.load %arg2[%c0_29, %c0_30] : memref<8x144xbf16, #tpu.memory_space<vmem>>, vector<8x144xbf16>
    %c0_31 = arith.constant 0 : index
    %c0_32 = arith.constant 0 : index
    %57 = vector.load %arg7[%c0_31, %c0_32] : memref<144x768xbf16, #tpu.memory_space<vmem>>, vector<144x768xbf16>
    %cst = arith.constant dense<0.000000e+00> : vector<8x768xf32>
    %58 = tpu.matmul %56, %57, %cst {dimension_numbers = #tpu.dot_dimension_numbers<[1], [0], [0], [1], [0, 0, 1, 1], [], []>} : vector<8x144xbf16>, vector<144x768xbf16>, vector<8x768xf32> -> vector<8x768xf32>
    %c0_33 = arith.constant 0 : index
    %c0_34 = arith.constant 0 : index
    %59 = vector.load %arg3[%c0_33, %c0_34] : memref<8x1xf32, #tpu.memory_space<vmem>>, vector<8x1xf32>
    %60 = vector.broadcast %59 : vector<8x1xf32> to vector<8x768xf32>
    %61 = arith.addf %58, %60 : vector<8x768xf32>
    %cst_35 = arith.constant 0.000000e+00 : f32
    %62 = vector.broadcast %cst_35 : f32 to vector<8x768xf32>
    %63 = arith.cmpf oge, %61, %62 : vector<8x768xf32>
    %cst_36 = arith.constant 2.000000e-01 : f32
    %64 = vector.broadcast %cst_36 : f32 to vector<8x768xf32>
    %65 = arith.mulf %64, %61 : vector<8x768xf32>
    %66 = arith.select %63, %61, %65 : vector<8x768xi1>, vector<8x768xf32>
    %67 = vector.extract_strided_slice %66 {offsets = [0, 0], sizes = [8, 384], strides = [1, 1]} : vector<8x768xf32> to vector<8x384xf32>
    %c2_i32 = arith.constant 2 : i32
    %68 = arith.muli %arg0, %c2_i32 : i32
    %c0_i32 = arith.constant 0 : i32
    %69 = arith.addi %68, %c0_i32 : i32
    %70 = arith.index_cast %69 : i32 to index
    %c0_37 = arith.constant 0 : index
    %c0_38 = arith.constant 0 : index
    %71 = vector.load %arg6[%70, %c0_37, %c0_38] : memref<2x8x384xf32, #tpu.memory_space<vmem>>, vector<1x8x384xf32>
    %72 = vector.shape_cast %71 : vector<1x8x384xf32> to vector<8x384xf32>
    %73 = vector.shape_cast %67 : vector<8x384xf32> to vector<1x8x384xf32>
    tpu.vector_store %arg6[%70, %c0_37, %c0_38], %73 {strides = array<i32>} : memref<2x8x384xf32, #tpu.memory_space<vmem>>, vector<1x8x384xf32>,
    %74 = vector.extract_strided_slice %66 {offsets = [0, 384], sizes = [8, 384], strides = [1, 1]} : vector<8x768xf32> to vector<8x384xf32>
    %c2_i32_39 = arith.constant 2 : i32
    %75 = arith.muli %arg0, %c2_i32_39 : i32
    %c1_i32 = arith.constant 1 : i32
    %76 = arith.addi %75, %c1_i32 : i32
    %77 = arith.index_cast %76 : i32 to index
    %c0_40 = arith.constant 0 : index
    %c0_41 = arith.constant 0 : index
    %78 = vector.load %arg6[%77, %c0_40, %c0_41] : memref<2x8x384xf32, #tpu.memory_space<vmem>>, vector<1x8x384xf32>
    %79 = vector.shape_cast %78 : vector<1x8x384xf32> to vector<8x384xf32>
    %80 = vector.shape_cast %74 : vector<8x384xf32> to vector<1x8x384xf32>
    tpu.vector_store %arg6[%77, %c0_40, %c0_41], %80 {strides = array<i32>} : memref<2x8x384xf32, #tpu.memory_space<vmem>>, vector<1x8x384xf32>,
    %c0_i32_42 = arith.constant 0 : i32
    %81 = arith.cmpi eq, %arg0, %c0_i32_42 : i32
    %82 = arith.extui %81 : i1 to i32
    %c0_i32_43 = arith.constant 0 : i32
    %83 = arith.cmpi ne, %82, %c0_i32_43 : i32
    scf.if %83 {
      %84 = tpu.iota {dimensions = array<i32: 1>} : vector<1x384xi32>
      %c18_i32 = arith.constant 18 : i32
      %c0_i32_44 = arith.constant 0 : i32
      %85 = arith.cmpi eq, %c18_i32, %c0_i32_44 : i32
      %c1_i32_45 = arith.constant 1 : i32
      %86 = arith.select %85, %c1_i32_45, %c18_i32 : i32
      %87 = vector.broadcast %86 : i32 to vector<1x384xi32>
      %88 = arith.remsi %84, %87 : vector<1x384xi32>
      %c0_i32_46 = arith.constant 0 : i32
      %89 = vector.broadcast %c0_i32_46 : i32 to vector<1x384xi32>
      %90 = arith.cmpi ne, %88, %89 : vector<1x384xi32>
      %c0_i32_47 = arith.constant 0 : i32
      %91 = vector.broadcast %c0_i32_47 : i32 to vector<1x384xi32>
      %92 = arith.cmpi slt, %88, %91 : vector<1x384xi32>
      %c0_i32_48 = arith.constant 0 : i32
      %93 = arith.cmpi slt, %86, %c0_i32_48 : i32
      %94 = vector.broadcast %93 : i1 to vector<1x384xi1>
      %95 = vector.broadcast %94 : vector<1x384xi1> to vector<1x384xi1>
      %96 = arith.xori %92, %95 : vector<1x384xi1>
      %97 = arith.andi %96, %90 : vector<1x384xi1>
      %98 = vector.broadcast %86 : i32 to vector<1x384xi32>
      %99 = arith.addi %88, %98 : vector<1x384xi32>
      %100 = arith.select %97, %99, %88 : vector<1x384xi1>, vector<1x384xi32>
      %c16_i32 = arith.constant 16 : i32
      %101 = vector.broadcast %c16_i32 : i32 to vector<1x384xi32>
      %102 = arith.cmpi slt, %100, %101 : vector<1x384xi32>
      %c288_i32 = arith.constant 288 : i32
      %103 = vector.broadcast %c288_i32 : i32 to vector<1x384xi32>
      %104 = arith.cmpi slt, %84, %103 : vector<1x384xi32>
      %105 = arith.andi %102, %104 : vector<1x384xi1>
      %106 = arith.extui %105 : vector<1x384xi1> to vector<1x384xi32>
      %107 = arith.sitofp %106 : vector<1x384xi32> to vector<1x384xf32>
      %cst_49 = arith.constant 0.000000e+00 : f32
      %108 = vector.broadcast %cst_49 : f32 to vector<8x1xf32>
      %c0_50 = arith.constant 0 : index
      %c0_51 = arith.constant 0 : index
      %c0_52 = arith.constant 0 : index
      %109 = vector.load %arg6[%c0_50, %c0_51, %c0_52] : memref<2x8x384xf32, #tpu.memory_space<vmem>>, vector<1x8x384xf32>
      %110 = vector.shape_cast %109 : vector<1x8x384xf32> to vector<8x384xf32>
      %111 = vector.broadcast %107 : vector<1x384xf32> to vector<8x384xf32>
      %112 = arith.mulf %110, %111 : vector<8x384xf32>
      %cst_53 = arith.constant dense<0.000000e+00> : vector<8xf32>
      %113 = vector.multi_reduction <add>, %112, %cst_53 [1] : vector<8x384xf32> to vector<8xf32>
      %114 = vector.shape_cast %113 : vector<8xf32> to vector<8x1xf32>
      %115 = arith.addf %108, %114 : vector<8x1xf32>
      %c1 = arith.constant 1 : index
      %c0_54 = arith.constant 0 : index
      %c0_55 = arith.constant 0 : index
      %116 = vector.load %arg6[%c1, %c0_54, %c0_55] : memref<2x8x384xf32, #tpu.memory_space<vmem>>, vector<1x8x384xf32>
      %117 = vector.shape_cast %116 : vector<1x8x384xf32> to vector<8x384xf32>
      %118 = vector.broadcast %107 : vector<1x384xf32> to vector<8x384xf32>
      %119 = arith.mulf %117, %118 : vector<8x384xf32>
      %cst_56 = arith.constant dense<0.000000e+00> : vector<8xf32>
      %120 = vector.multi_reduction <add>, %119, %cst_56 [1] : vector<8x384xf32> to vector<8xf32>
      %121 = vector.shape_cast %120 : vector<8xf32> to vector<8x1xf32>
      %122 = arith.addf %115, %121 : vector<8x1xf32>
      %cst_57 = arith.constant 0.001953125 : f32
      %123 = vector.broadcast %cst_57 : f32 to vector<8x1xf32>
      %124 = arith.mulf %122, %123 : vector<8x1xf32>
      %cst_58 = arith.constant 0.000000e+00 : f32
      %125 = vector.broadcast %cst_58 : f32 to vector<8x1xf32>
      %c0_59 = arith.constant 0 : index
      %c0_60 = arith.constant 0 : index
      %c0_61 = arith.constant 0 : index
      %126 = vector.load %arg6[%c0_59, %c0_60, %c0_61] : memref<2x8x384xf32, #tpu.memory_space<vmem>>, vector<1x8x384xf32>
      %127 = vector.shape_cast %126 : vector<1x8x384xf32> to vector<8x384xf32>
      %128 = vector.broadcast %124 : vector<8x1xf32> to vector<8x384xf32>
      %129 = arith.subf %127, %128 : vector<8x384xf32>
      %130 = vector.broadcast %107 : vector<1x384xf32> to vector<8x384xf32>
      %131 = arith.mulf %129, %130 : vector<8x384xf32>
      %132 = arith.mulf %131, %131 : vector<8x384xf32>
      %cst_62 = arith.constant dense<0.000000e+00> : vector<8xf32>
      %133 = vector.multi_reduction <add>, %132, %cst_62 [1] : vector<8x384xf32> to vector<8xf32>
      %134 = vector.shape_cast %133 : vector<8xf32> to vector<8x1xf32>
      %135 = arith.addf %125, %134 : vector<8x1xf32>
      %c1_63 = arith.constant 1 : index
      %c0_64 = arith.constant 0 : index
      %c0_65 = arith.constant 0 : index
      %136 = vector.load %arg6[%c1_63, %c0_64, %c0_65] : memref<2x8x384xf32, #tpu.memory_space<vmem>>, vector<1x8x384xf32>
      %137 = vector.shape_cast %136 : vector<1x8x384xf32> to vector<8x384xf32>
      %138 = vector.broadcast %124 : vector<8x1xf32> to vector<8x384xf32>
      %139 = arith.subf %137, %138 : vector<8x384xf32>
      %140 = vector.broadcast %107 : vector<1x384xf32> to vector<8x384xf32>
      %141 = arith.mulf %139, %140 : vector<8x384xf32>
      %142 = arith.mulf %141, %141 : vector<8x384xf32>
      %cst_66 = arith.constant dense<0.000000e+00> : vector<8xf32>
      %143 = vector.multi_reduction <add>, %142, %cst_66 [1] : vector<8x384xf32> to vector<8xf32>
      %144 = vector.shape_cast %143 : vector<8xf32> to vector<8x1xf32>
      %145 = arith.addf %135, %144 : vector<8x1xf32>
      %cst_67 = arith.constant 0.001953125 : f32
      %146 = vector.broadcast %cst_67 : f32 to vector<8x1xf32>
      %147 = arith.mulf %145, %146 : vector<8x1xf32>
      %c0_68 = arith.constant 0 : index
      %c0_69 = arith.constant 0 : index
      %148 = vector.load %arg4[%c0_68, %c0_69] : memref<8x1xf32, #tpu.memory_space<vmem>>, vector<8x1xf32>
      %cst_70 = arith.constant 9.99999974E-6 : f32
      %149 = vector.broadcast %cst_70 : f32 to vector<8x1xf32>
      %150 = arith.addf %147, %149 : vector<8x1xf32>
      %151 = math.rsqrt %150 : vector<8x1xf32>
      %152 = arith.mulf %148, %151 : vector<8x1xf32>
      %c0_71 = arith.constant 0 : index
      %c0_72 = arith.constant 0 : index
      %153 = vector.load %arg5[%c0_71, %c0_72] : memref<8x1xf32, #tpu.memory_space<vmem>>, vector<8x1xf32>
      %154 = arith.mulf %124, %152 : vector<8x1xf32>
      %155 = arith.subf %153, %154 : vector<8x1xf32>
      %c0_73 = arith.constant 0 : index
      %c0_74 = arith.constant 0 : index
      %c0_75 = arith.constant 0 : index
      %156 = vector.load %arg6[%c0_73, %c0_74, %c0_75] : memref<2x8x384xf32, #tpu.memory_space<vmem>>, vector<1x8x384xf32>
      %157 = vector.shape_cast %156 : vector<1x8x384xf32> to vector<8x384xf32>
      %158 = vector.broadcast %152 : vector<8x1xf32> to vector<8x384xf32>
      %159 = arith.mulf %157, %158 : vector<8x384xf32>
      %160 = vector.broadcast %155 : vector<8x1xf32> to vector<8x384xf32>
      %161 = arith.addf %159, %160 : vector<8x384xf32>
      %c0_76 = arith.constant 0 : index
      %c0_77 = arith.constant 0 : index
      %c0_78 = arith.constant 0 : index
      %162 = vector.load %arg6[%c0_76, %c0_77, %c0_78] : memref<2x8x384xf32, #tpu.memory_space<vmem>>, vector<1x8x384xf32>
      %163 = vector.shape_cast %162 : vector<1x8x384xf32> to vector<8x384xf32>
      %164 = vector.shape_cast %161 : vector<8x384xf32> to vector<1x8x384xf32>
      tpu.vector_store %arg6[%c0_76, %c0_77, %c0_78], %164 {strides = array<i32>} : memref<2x8x384xf32, #tpu.memory_space<vmem>>, vector<1x8x384xf32>,
      %c1_79 = arith.constant 1 : index
      %c0_80 = arith.constant 0 : index
      %c0_81 = arith.constant 0 : index
      %165 = vector.load %arg6[%c1_79, %c0_80, %c0_81] : memref<2x8x384xf32, #tpu.memory_space<vmem>>, vector<1x8x384xf32>
      %166 = vector.shape_cast %165 : vector<1x8x384xf32> to vector<8x384xf32>
      %167 = vector.broadcast %152 : vector<8x1xf32> to vector<8x384xf32>
      %168 = arith.mulf %166, %167 : vector<8x384xf32>
      %169 = vector.broadcast %155 : vector<8x1xf32> to vector<8x384xf32>
      %170 = arith.addf %168, %169 : vector<8x384xf32>
      %c1_82 = arith.constant 1 : index
      %c0_83 = arith.constant 0 : index
      %c0_84 = arith.constant 0 : index
      %171 = vector.load %arg6[%c1_82, %c0_83, %c0_84] : memref<2x8x384xf32, #tpu.memory_space<vmem>>, vector<1x8x384xf32>
      %172 = vector.shape_cast %171 : vector<1x8x384xf32> to vector<8x384xf32>
      %173 = vector.shape_cast %170 : vector<8x384xf32> to vector<1x8x384xf32>
      tpu.vector_store %arg6[%c1_82, %c0_83, %c0_84], %173 {strides = array<i32>} : memref<2x8x384xf32, #tpu.memory_space<vmem>>, vector<1x8x384xf32>,
    } else {
    }
    return
  }
  func.func @transform_0(%arg0: i32) -> (i32, i32, i32) {
    %c0_i32 = arith.constant 0 : i32
    %c0_i32_0 = arith.constant 0 : i32
    %c0_i32_1 = arith.constant 0 : i32
    return %arg0, %c0_i32, %c0_i32_0 : i32, i32, i32
  }
  func.func @transform_1(%arg0: i32) -> (i32, i32) {
    %c0_i32 = arith.constant 0 : i32
    %c0_i32_0 = arith.constant 0 : i32
    %c0_i32_1 = arith.constant 0 : i32
    return %c0_i32, %c0_i32_0 : i32, i32
  }
  func.func @transform_2(%arg0: i32) -> (i32, i32) {
    %c0_i32 = arith.constant 0 : i32
    %c0_i32_0 = arith.constant 0 : i32
    %c0_i32_1 = arith.constant 0 : i32
    return %c0_i32, %c0_i32_0 : i32, i32
  }
  func.func @transform_3(%arg0: i32) -> (i32, i32) {
    %c0_i32 = arith.constant 0 : i32
    %c0_i32_0 = arith.constant 0 : i32
    %c0_i32_1 = arith.constant 0 : i32
    return %c0_i32, %c0_i32_0 : i32, i32
  }
  func.func @transform_4(%arg0: i32) -> (i32, i32) {
    %c0_i32 = arith.constant 0 : i32
    %c0_i32_0 = arith.constant 0 : i32
    %c0_i32_1 = arith.constant 0 : i32
    return %c0_i32, %c0_i32_0 : i32, i32
  }
  func.func @transform_5(%arg0: i32) -> (i32, i32, i32) {
    %c0_i32 = arith.constant 0 : i32
    %c0_i32_0 = arith.constant 0 : i32
    %c0_i32_1 = arith.constant 0 : i32
    %c0_i32_2 = arith.constant 0 : i32
    return %c0_i32, %c0_i32_0, %c0_i32_1 : i32, i32, i32
  }
}

</mosaic_0001>

<llo_original>
// kernel: conv_block_forward.1
$region0: #{conv_block_forward.1}
  #allocation0 [shape = 'u32[]', space=smem, size = 0x4, offset = 0x4, fixed_abs, tag = 'smem constant byte address 0x4 - core index']
  #allocation1 [shape = 'u32[72,128]{1,0:T(1,128)}', space=vmem, size = 0x9000, scoped, tag = 'internal scratch']
  #allocation2 [shape = 'bf16[144,768]{1,0:T(8,128)(2,1)}', space=vmem, size = 0x36000, scoped, tag = 'scratch operand']
  %s0 = inlined_call_operand.vmem [shape: f32[2,16,432], index: 0, kind: input, shape index: {}]
  %s1 = inlined_call_operand.vmem [shape: bf16[8,144], index: 1, kind: input, shape index: {}]
  %s2 = inlined_call_operand.vmem [shape: f32[8,1], index: 2, kind: input, shape index: {}]
  %s3 = inlined_call_operand.vmem [shape: f32[8,1], index: 3, kind: input, shape index: {}]
  %s4 = inlined_call_operand.vmem [shape: f32[8,1], index: 4, kind: input, shape index: {}]
  %s5 = inlined_call_operand.vmem [shape: f32[2,8,384], index: 5, kind: output, shape index: {}]
  %s6 = sld [smem:[#allocation0]]
  $region34: #{conv_block_forward.1} parent=0
    _
  %s8 = ssub.s32 1, %s6
  %s9 = scalar_select 0, %s8, %s6
  // Predicated region
  $region2: #{conv_block_forward.1} parent=0 // pred_check
    _
  $region3: #{conv_block_forward.1} parent=0 // pred_check_branch
    %11 = sbr.rel (0) target = $region5
  $region4: #{conv_block_forward.1} parent=0 // pred_region
    _
  $region5: #{conv_block_forward.1} parent=0 // pred_fallthru
    _
  // Predicated region
  $region6: #{conv_block_forward.1} parent=0 // pred_check
    _
  $region7: #{conv_block_forward.1} parent=0 // pred_check_branch
    %13 = sbr.rel (0) target = $region9
  $region8: #{conv_block_forward.1} parent=0 // pred_region
    _
  $region9: #{conv_block_forward.1} parent=0 // pred_fallthru
    _
  // Predicated region
  $region10: #{conv_block_forward.1} parent=0 // pred_check
    _
  $region11: #{conv_block_forward.1} parent=0 // pred_check_branch
    %15 = sbr.rel (0) target = $region13
  $region12: #{conv_block_forward.1} parent=0 // pred_region
    _
  $region13: #{conv_block_forward.1} parent=0 // pred_fallthru
    _
  // Predicated region
  $region14: #{conv_block_forward.1} parent=0 // pred_check
    _
  $region15: #{conv_block_forward.1} parent=0 // pred_check_branch
    %17 = sbr.rel (0) target = $region17
  $region16: #{conv_block_forward.1} parent=0 // pred_region
    _
  $region17: #{conv_block_forward.1} parent=0 // pred_fallthru
    _
  // Predicated region
  $region18: #{conv_block_forward.1} parent=0 // pred_check
    _
  $region19: #{conv_block_forward.1} parent=0 // pred_check_branch
    %19 = sbr.rel (0) target = $region21
  $region20: #{conv_block_forward.1} parent=0 // pred_region
    _
  $region21: #{conv_block_forward.1} parent=0 // pred_fallthru
    _
  %v21 = vld [vmem:[%s0] sm:$0xff]
  %v22 = vld [vmem:[%s0 + $0x8] sm:$0xff]
  %v23 = vld [vmem:[%s0 + $0x10] sm:$0xff]
  %v24 = vld [vmem:[%s0 + $0x18] sm:$0xff]
  %v25 = vld [vmem:[%s0 + $0x20] sm:$0xff]
  %v26 = vld [vmem:[%s0 + $0x28] sm:$0xff]
  %v27 = vld [vmem:[%s0 + $0x30] sm:$0xff]
  %v28 = vld [vmem:[%s0 + $0x38] sm:$0xff]
  %v29 = vld [vmem:[%s0 + $0x40] sm:$0xff]
  %v30 = vld [vmem:[%s0 + $0x48] sm:$0xff]
  %v31 = vld [vmem:[%s0 + $0x50] sm:$0xff]
  %v32 = vld [vmem:[%s0 + $0x58] sm:$0xff]
  %v33 = vld [vmem:[%s0 + $0x60] sm:$0xff]
  %v34 = vld [vmem:[%s0 + $0x68] sm:$0xff]
  %v35 = vld [vmem:[%s0 + $0x70] sm:$0xff]
  %v36 = vld [vmem:[%s0 + $0x78] sm:$0xff]
  %v37 = vpack.c.bf16 %v22, %v21
  %v38 = vpack.c.bf16 %v24, %v23
  %v39 = vpack.c.bf16 %v26, %v25
  %v40 = vpack.c.bf16 %v28, %v27
  %v41 = vpack.c.bf16 %v30, %v29
  %v42 = vpack.c.bf16 %v32, %v31
  %v43 = vpack.c.bf16 %v34, %v33
  %v44 = vpack.c.bf16 %v36, %v35
  %45 = vst [vmem:[#allocation2] sm:$0xff] %v37
  %46 = vst [vmem:[#allocation2 + $0x8] sm:$0xf] %v38
  %47 = vst [vmem:[#allocation2 + $0x18] sm:$0xff] %v39
  %48 = vst [vmem:[#allocation2 + $0x20] sm:$0xf] %v40
  %53 = vrot.lane.b32.xlu0 %v37, 127
  %v54 = vpop.permute.xlu0 %53
  %55 = vrot.lane.b32.xlu0 %v38, 127
  %v56 = vpop.permute.xlu0 %55
  %57 = vrot.lane.b32.xlu0 %v39, 127
  %v58 = vpop.permute.xlu0 %57
  %59 = vrot.lane.b32.xlu0 %v40, 127
  %v60 = vpop.permute.xlu0 %59
  %v61 = vrot.slane %v54, 4
  %v62 = vrot.slane %v56, 4
  %v63 = vrot.slane %v58, 4
  %v64 = vrot.slane %v60, 4
  %vm65 = vcmask 1043456
  %v66 = vsel %vm65, %v61, %v62
  %vm67 = vcmask 1039360
  %v68 = vsel %vm67, %v54, %v66
  %v69 = vsel %vm67, %v56, %v62
  %v70 = vsel %vm65, %v63, %v64
  %v71 = vsel %vm67, %v58, %v70
  %v72 = vsel %vm67, %v60, %v64
  %77 = vst [vmem:[#allocation2 + $0x30] sm:$0xff] %v68
  %78 = vst [vmem:[#allocation2 + $0x38] sm:$0xf] %v69
  %79 = vst [vmem:[#allocation2 + $0x48] sm:$0xff] %v71
  %80 = vst [vmem:[#allocation2 + $0x50] sm:$0xf] %v72
  %81 = vrot.lane.b32.xlu0 %v37, 126
  %v82 = vpop.permute.xlu0 %81
  %83 = vrot.lane.b32.xlu0 %v38, 126
  %v84 = vpop.permute.xlu0 %83
  %85 = vrot.lane.b32.xlu0 %v39, 126
  %v86 = vpop.permute.xlu0 %85
  %87 = vrot.lane.b32.xlu0 %v40, 126
  %v88 = vpop.permute.xlu0 %87
  %v89 = vrot.slane %v82, 4
  %v90 = vrot.slane %v84, 4
  %v91 = vrot.slane %v86, 4
  %v92 = vrot.slane %v88, 4
  %v93 = vsel %vm65, %v89, %v90
  %vm94 = vcmask 1031168
  %v95 = vsel %vm94, %v82, %v93
  %v96 = vsel %vm94, %v84, %v90
  %v97 = vsel %vm65, %v91, %v92
  %v98 = vsel %vm94, %v86, %v97
  %v99 = vsel %vm94, %v88, %v92
  %104 = vst [vmem:[#allocation2 + $0x60] sm:$0xff] %v95
  %105 = vst [vmem:[#allocation2 + $0x68] sm:$0xf] %v96
  %106 = vst [vmem:[#allocation2 + $0x78] sm:$0xff] %v98
  %107 = vst [vmem:[#allocation2 + $0x80] sm:$0xf] %v99
  %108 = vrot.lane.b32.xlu0 %v37, 110
  %v109 = vpop.permute.xlu0 %108
  %110 = vrot.lane.b32.xlu0 %v38, 110
  %v111 = vpop.permute.xlu0 %110
  %112 = vrot.lane.b32.xlu0 %v39, 110
  %v113 = vpop.permute.xlu0 %112
  %114 = vrot.lane.b32.xlu0 %v40, 110
  %v115 = vpop.permute.xlu0 %114
  %v116 = vrot.slane %v109, 4
  %v117 = vrot.slane %v111, 4
  %v118 = vrot.slane %v113, 4
  %v119 = vrot.slane %v115, 4
  %v120 = vsel %vm65, %v116, %v117
  %vm121 = vcmask 900096
  %v122 = vsel %vm121, %v109, %v120
  %v123 = vsel %vm121, %v111, %v117
  %v124 = vsel %vm65, %v118, %v119
  %v125 = vsel %vm121, %v113, %v124
  %v126 = vsel %vm121, %v115, %v119
  %131 = vst [vmem:[#allocation2 + $0x90] sm:$0xff] %v122
  %132 = vst [vmem:[#allocation2 + $0x98] sm:$0xf] %v123
  %133 = vst [vmem:[#allocation2 + $0xa8] sm:$0xff] %v125
  %134 = vst [vmem:[#allocation2 + $0xb0] sm:$0xf] %v126
  %135 = vrot.lane.b32.xlu0 %v37, 109
  %v136 = vpop.permute.xlu0 %135
  %137 = vrot.lane.b32.xlu0 %v38, 109
  %v138 = vpop.permute.xlu0 %137
  %139 = vrot.lane.b32.xlu0 %v39, 109
  %v140 = vpop.permute.xlu0 %139
  %141 = vrot.lane.b32.xlu0 %v40, 109
  %v142 = vpop.permute.xlu0 %141
  %v143 = vrot.slane %v136, 4
  %v144 = vrot.slane %v138, 4
  %v145 = vrot.slane %v140, 4
  %v146 = vrot.slane %v142, 4
  %v147 = vsel %vm65, %v143, %v144
  %vm148 = vcmask 891904
  %v149 = vsel %vm148, %v136, %v147
  %v150 = vsel %vm148, %v138, %v144
  %v151 = vsel %vm65, %v145, %v146
  %v152 = vsel %vm148, %v140, %v151
  %v153 = vsel %vm148, %v142, %v146
  %158 = vst [vmem:[#allocation2 + $0xc0] sm:$0xff] %v149
  %159 = vst [vmem:[#allocation2 + $0xc8] sm:$0xf] %v150
  %160 = vst [vmem:[#allocation2 + $0xd8] sm:$0xff] %v152
  %161 = vst [vmem:[#allocation2 + $0xe0] sm:$0xf] %v153
  %162 = vrot.lane.b32.xlu0 %v37, 108
  %v163 = vpop.permute.xlu0 %162
  %164 = vrot.lane.b32.xlu0 %v38, 108
  %v165 = vpop.permute.xlu0 %164
  %166 = vrot.lane.b32.xlu0 %v39, 108
  %v167 = vpop.permute.xlu0 %166
  %168 = vrot.lane.b32.xlu0 %v40, 108
  %v169 = vpop.permute.xlu0 %168
  %v170 = vrot.slane %v163, 4
  %v171 = vrot.slane %v165, 4
  %v172 = vrot.slane %v167, 4
  %v173 = vrot.slane %v169, 4
  %v174 = vsel %vm65, %v170, %v171
  %vm175 = vcmask 883712
  %v176 = vsel %vm175, %v163, %v174
  %v177 = vsel %vm175, %v165, %v171
  %v178 = vsel %vm65, %v172, %v173
  %v179 = vsel %vm175, %v167, %v178
  %v180 = vsel %vm175, %v169, %v173
  %185 = vst [vmem:[#allocation2 + $0xf0] sm:$0xff] %v176
  %186 = vst [vmem:[#allocation2 + $0xf8] sm:$0xf] %v177
  %187 = vst [vmem:[#allocation2 + $0x108] sm:$0xff] %v179
  %188 = vst [vmem:[#allocation2 + $0x110] sm:$0xf] %v180
  %189 = vrot.lane.b32.xlu0 %v37, 92
  %v190 = vpop.permute.xlu0 %189
  %191 = vrot.lane.b32.xlu0 %v38, 92
  %v192 = vpop.permute.xlu0 %191
  %193 = vrot.lane.b32.xlu0 %v39, 92
  %v194 = vpop.permute.xlu0 %193
  %195 = vrot.lane.b32.xlu0 %v40, 92
  %v196 = vpop.permute.xlu0 %195
  %v197 = vrot.slane %v190, 4
  %v198 = vrot.slane %v192, 4
  %v199 = vrot.slane %v194, 4
  %v200 = vrot.slane %v196, 4
  %v201 = vsel %vm65, %v197, %v198
  %vm202 = vcmask 752640
  %v203 = vsel %vm202, %v190, %v201
  %v204 = vsel %vm202, %v192, %v198
  %v205 = vsel %vm65, %v199, %v200
  %v206 = vsel %vm202, %v194, %v205
  %v207 = vsel %vm202, %v196, %v200
  %212 = vst [vmem:[#allocation2 + $0x120] sm:$0xff] %v203
  %213 = vst [vmem:[#allocation2 + $0x128] sm:$0xf] %v204
  %214 = vst [vmem:[#allocation2 + $0x138] sm:$0xff] %v206
  %215 = vst [vmem:[#allocation2 + $0x140] sm:$0xf] %v207
  %216 = vrot.lane.b32.xlu0 %v37, 91
  %v217 = vpop.permute.xlu0 %216
  %218 = vrot.lane.b32.xlu0 %v38, 91
  %v219 = vpop.permute.xlu0 %218
  %220 = vrot.lane.b32.xlu0 %v39, 91
  %v221 = vpop.permute.xlu0 %220
  %222 = vrot.lane.b32.xlu0 %v40, 91
  %v223 = vpop.permute.xlu0 %222
  %v224 = vrot.slane %v217, 4
  %v225 = vrot.slane %v219, 4
  %v226 = vrot.slane %v221, 4
  %v227 = vrot.slane %v223, 4
  %v228 = vsel %vm65, %v224, %v225
  %vm229 = vcmask 744448
  %v230 = vsel %vm229, %v217, %v228
  %v231 = vsel %vm229, %v219, %v225
  %v232 = vsel %vm65, %v226, %v227
  %v233 = vsel %vm229, %v221, %v232
  %v234 = vsel %vm229, %v223, %v227
  %239 = vst [vmem:[#allocation2 + $0x150] sm:$0xff] %v230
  %240 = vst [vmem:[#allocation2 + $0x158] sm:$0xf] %v231
  %241 = vst [vmem:[#allocation2 + $0x168] sm:$0xff] %v233
  %242 = vst [vmem:[#allocation2 + $0x170] sm:$0xf] %v234
  %243 = vrot.lane.b32.xlu0 %v37, 90
  %v244 = vpop.permute.xlu0 %243
  %245 = vrot.lane.b32.xlu0 %v38, 90
  %v246 = vpop.permute.xlu0 %245
  %247 = vrot.lane.b32.xlu0 %v39, 90
  %v248 = vpop.permute.xlu0 %247
  %249 = vrot.lane.b32.xlu0 %v40, 90
  %v250 = vpop.permute.xlu0 %249
  %v251 = vrot.slane %v244, 4
  %v252 = vrot.slane %v246, 4
  %v253 = vrot.slane %v248, 4
  %v254 = vrot.slane %v250, 4
  %v255 = vsel %vm65, %v251, %v252
  %vm256 = vcmask 736256
  %v257 = vsel %vm256, %v244, %v255
  %v258 = vsel %vm256, %v246, %v252
  %v259 = vsel %vm65, %v253, %v254
  %v260 = vsel %vm256, %v248, %v259
  %v261 = vsel %vm256, %v250, %v254
  %266 = vst [vmem:[#allocation2 + $0x180] sm:$0xff] %v257
  %267 = vst [vmem:[#allocation2 + $0x188] sm:$0xf] %v258
  %268 = vst [vmem:[#allocation2 + $0x198] sm:$0xff] %v260
  %269 = vst [vmem:[#allocation2 + $0x1a0] sm:$0xf] %v261
  %270 = vst [vmem:[#allocation2 + $0xc] sm:$0xff] %v41
  %271 = vst [vmem:[#allocation2 + $0x14] sm:$0xf] %v42
  %272 = vst [vmem:[#allocation2 + $0x24] sm:$0xff] %v43
  %273 = vst [vmem:[#allocation2 + $0x2c] sm:$0xf] %v44
  %278 = vrot.lane.b32.xlu0 %v41, 127
  %v279 = vpop.permute.xlu0 %278
  %280 = vrot.lane.b32.xlu0 %v42, 127
  %v281 = vpop.permute.xlu0 %280
  %282 = vrot.lane.b32.xlu0 %v43, 127
  %v283 = vpop.permute.xlu0 %282
  %284 = vrot.lane.b32.xlu0 %v44, 127
  %v285 = vpop.permute.xlu0 %284
  %v286 = vrot.slane %v279, 4
  %v287 = vrot.slane %v281, 4
  %v288 = vrot.slane %v283, 4
  %v289 = vrot.slane %v285, 4
  %v290 = vsel %vm65, %v286, %v287
  %v291 = vsel %vm67, %v279, %v290
  %v292 = vsel %vm67, %v281, %v287
  %v293 = vsel %vm65, %v288, %v289
  %v294 = vsel %vm67, %v283, %v293
  %v295 = vsel %vm67, %v285, %v289
  %300 = vst [vmem:[#allocation2 + $0x3c] sm:$0xff] %v291
  %301 = vst [vmem:[#allocation2 + $0x44] sm:$0xf] %v292
  %302 = vst [vmem:[#allocation2 + $0x54] sm:$0xff] %v294
  %303 = vst [vmem:[#allocation2 + $0x5c] sm:$0xf] %v295
  %304 = vrot.lane.b32.xlu0 %v41, 126
  %v305 = vpop.permute.xlu0 %304
  %306 = vrot.lane.b32.xlu0 %v42, 126
  %v307 = vpop.permute.xlu0 %306
  %308 = vrot.lane.b32.xlu0 %v43, 126
  %v309 = vpop.permute.xlu0 %308
  %310 = vrot.lane.b32.xlu0 %v44, 126
  %v311 = vpop.permute.xlu0 %310
  %v312 = vrot.slane %v305, 4
  %v313 = vrot.slane %v307, 4
  %v314 = vrot.slane %v309, 4
  %v315 = vrot.slane %v311, 4
  %v316 = vsel %vm65, %v312, %v313
  %v317 = vsel %vm94, %v305, %v316
  %v318 = vsel %vm94, %v307, %v313
  %v319 = vsel %vm65, %v314, %v315
  %v320 = vsel %vm94, %v309, %v319
  %v321 = vsel %vm94, %v311, %v315
  %326 = vst [vmem:[#allocation2 + $0x6c] sm:$0xff] %v317
  %327 = vst [vmem:[#allocation2 + $0x74] sm:$0xf] %v318
  %328 = vst [vmem:[#allocation2 + $0x84] sm:$0xff] %v320
  %329 = vst [vmem:[#allocation2 + $0x8c] sm:$0xf] %v321
  %330 = vrot.lane.b32.xlu0 %v41, 110
  %v331 = vpop.permute.xlu0 %330
  %332 = vrot.lane.b32.xlu0 %v42, 110
  %v333 = vpop.permute.xlu0 %332
  %334 = vrot.lane.b32.xlu0 %v43, 110
  %v335 = vpop.permute.xlu0 %334
  %336 = vrot.lane.b32.xlu0 %v44, 110
  %v337 = vpop.permute.xlu0 %336
  %v338 = vrot.slane %v331, 4
  %v339 = vrot.slane %v333, 4
  %v340 = vrot.slane %v335, 4
  %v341 = vrot.slane %v337, 4
  %v342 = vsel %vm65, %v338, %v339
  %v343 = vsel %vm121, %v331, %v342
  %v344 = vsel %vm121, %v333, %v339
  %v345 = vsel %vm65, %v340, %v341
  %v346 = vsel %vm121, %v335, %v345
  %v347 = vsel %vm121, %v337, %v341
  %352 = vst [vmem:[#allocation2 + $0x9c] sm:$0xff] %v343
  %353 = vst [vmem:[#allocation2 + $0xa4] sm:$0xf] %v344
  %354 = vst [vmem:[#allocation2 + $0xb4] sm:$0xff] %v346
  %355 = vst [vmem:[#allocation2 + $0xbc] sm:$0xf] %v347
  %356 = vrot.lane.b32.xlu0 %v41, 109
  %v357 = vpop.permute.xlu0 %356
  %358 = vrot.lane.b32.xlu0 %v42, 109
  %v359 = vpop.permute.xlu0 %358
  %360 = vrot.lane.b32.xlu0 %v43, 109
  %v361 = vpop.permute.xlu0 %360
  %362 = vrot.lane.b32.xlu0 %v44, 109
  %v363 = vpop.permute.xlu0 %362
  %v364 = vrot.slane %v357, 4
  %v365 = vrot.slane %v359, 4
  %v366 = vrot.slane %v361, 4
  %v367 = vrot.slane %v363, 4
  %v368 = vsel %vm65, %v364, %v365
  %v369 = vsel %vm148, %v357, %v368
  %v370 = vsel %vm148, %v359, %v365
  %v371 = vsel %vm65, %v366, %v367
  %v372 = vsel %vm148, %v361, %v371
  %v373 = vsel %vm148, %v363, %v367
  %378 = vst [vmem:[#allocation2 + $0xcc] sm:$0xff] %v369
  %379 = vst [vmem:[#allocation2 + $0xd4] sm:$0xf] %v370
  %380 = vst [vmem:[#allocation2 + $0xe4] sm:$0xff] %v372
  %381 = vst [vmem:[#allocation2 + $0xec] sm:$0xf] %v373
  %382 = vrot.lane.b32.xlu0 %v41, 108
  %v383 = vpop.permute.xlu0 %382
  %384 = vrot.lane.b32.xlu0 %v42, 108
  %v385 = vpop.permute.xlu0 %384
  %386 = vrot.lane.b32.xlu0 %v43, 108
  %v387 = vpop.permute.xlu0 %386
  %388 = vrot.lane.b32.xlu0 %v44, 108
  %v389 = vpop.permute.xlu0 %388
  %v390 = vrot.slane %v383, 4
  %v391 = vrot.slane %v385, 4
  %v392 = vrot.slane %v387, 4
  %v393 = vrot.slane %v389, 4
  %v394 = vsel %vm65, %v390, %v391
  %v395 = vsel %vm175, %v383, %v394
  %v396 = vsel %vm175, %v385, %v391
  %v397 = vsel %vm65, %v392, %v393
  %v398 = vsel %vm175, %v387, %v397
  %v399 = vsel %vm175, %v389, %v393
  %404 = vst [vmem:[#allocation2 + $0xfc] sm:$0xff] %v395
  %405 = vst [vmem:[#allocation2 + $0x104] sm:$0xf] %v396
  %406 = vst [vmem:[#allocation2 + $0x114] sm:$0xff] %v398
  %407 = vst [vmem:[#allocation2 + $0x11c] sm:$0xf] %v399
  %408 = vrot.lane.b32.xlu0 %v41, 92
  %v409 = vpop.permute.xlu0 %408
  %410 = vrot.lane.b32.xlu0 %v42, 92
  %v411 = vpop.permute.xlu0 %410
  %412 = vrot.lane.b32.xlu0 %v43, 92
  %v413 = vpop.permute.xlu0 %412
  %414 = vrot.lane.b32.xlu0 %v44, 92
  %v415 = vpop.permute.xlu0 %414
  %v416 = vrot.slane %v409, 4
  %v417 = vrot.slane %v411, 4
  %v418 = vrot.slane %v413, 4
  %v419 = vrot.slane %v415, 4
  %v420 = vsel %vm65, %v416, %v417
  %v421 = vsel %vm202, %v409, %v420
  %v422 = vsel %vm202, %v411, %v417
  %v423 = vsel %vm65, %v418, %v419
  %v424 = vsel %vm202, %v413, %v423
  %v425 = vsel %vm202, %v415, %v419
  %430 = vst [vmem:[#allocation2 + $0x12c] sm:$0xff] %v421
  %431 = vst [vmem:[#allocation2 + $0x134] sm:$0xf] %v422
  %432 = vst [vmem:[#allocation2 + $0x144] sm:$0xff] %v424
  %433 = vst [vmem:[#allocation2 + $0x14c] sm:$0xf] %v425
  %434 = vrot.lane.b32.xlu0 %v41, 91
  %v435 = vpop.permute.xlu0 %434
  %436 = vrot.lane.b32.xlu0 %v42, 91
  %v437 = vpop.permute.xlu0 %436
  %438 = vrot.lane.b32.xlu0 %v43, 91
  %v439 = vpop.permute.xlu0 %438
  %440 = vrot.lane.b32.xlu0 %v44, 91
  %v441 = vpop.permute.xlu0 %440
  %v442 = vrot.slane %v435, 4
  %v443 = vrot.slane %v437, 4
  %v444 = vrot.slane %v439, 4
  %v445 = vrot.slane %v441, 4
  %v446 = vsel %vm65, %v442, %v443
  %v447 = vsel %vm229, %v435, %v446
  %v448 = vsel %vm229, %v437, %v443
  %v449 = vsel %vm65, %v444, %v445
  %v450 = vsel %vm229, %v439, %v449
  %v451 = vsel %vm229, %v441, %v445
  %456 = vst [vmem:[#allocation2 + $0x15c] sm:$0xff] %v447
  %457 = vst [vmem:[#allocation2 + $0x164] sm:$0xf] %v448
  %458 = vst [vmem:[#allocation2 + $0x174] sm:$0xff] %v450
  %459 = vst [vmem:[#allocation2 + $0x17c] sm:$0xf] %v451
  %460 = vrot.lane.b32.xlu0 %v41, 90
  %v461 = vpop.permute.xlu0 %460
  %462 = vrot.lane.b32.xlu0 %v42, 90
  %v463 = vpop.permute.xlu0 %462
  %464 = vrot.lane.b32.xlu0 %v43, 90
  %v465 = vpop.permute.xlu0 %464
  %466 = vrot.lane.b32.xlu0 %v44, 90
  %v467 = vpop.permute.xlu0 %466
  %v468 = vrot.slane %v461, 4
  %v469 = vrot.slane %v463, 4
  %v470 = vrot.slane %v465, 4
  %v471 = vrot.slane %v467, 4
  %v472 = vsel %vm65, %v468, %v469
  %v473 = vsel %vm256, %v461, %v472
  %v474 = vsel %vm256, %v463, %v469
  %v475 = vsel %vm65, %v470, %v471
  %v476 = vsel %vm256, %v465, %v475
  %v477 = vsel %vm256, %v467, %v471
  %482 = vst [vmem:[#allocation2 + $0x18c] sm:$0xff] %v473
  %483 = vst [vmem:[#allocation2 + $0x194] sm:$0xf] %v474
  %484 = vst [vmem:[#allocation2 + $0x1a4] sm:$0xff] %v476
  %485 = vst [vmem:[#allocation2 + $0x1ac] sm:$0xf] %v477
  %v486 = vld [vmem:[%s1] sm:$0xff]
  %v487 = vld [vmem:[#allocation2] sm:$0xff]
  %v488 = vld [vmem:[#allocation2 + $0x8] sm:$0xff]
  %v489 = vld [vmem:[#allocation2 + $0x10] sm:$0xff]
  %v490 = vld [vmem:[#allocation2 + $0x18] sm:$0xff]
  %v491 = vld [vmem:[#allocation2 + $0x20] sm:$0xff]
  %v492 = vld [vmem:[#allocation2 + $0x28] sm:$0xff]
  %v493 = vld [vmem:[#allocation2 + $0x30] sm:$0xff]
  %v494 = vld [vmem:[#allocation2 + $0x38] sm:$0xff]
  %v495 = vld [vmem:[#allocation2 + $0x40] sm:$0xff]
  %v496 = vld [vmem:[#allocation2 + $0x48] sm:$0xff]
  %v497 = vld [vmem:[#allocation2 + $0x50] sm:$0xff]
  %v498 = vld [vmem:[#allocation2 + $0x58] sm:$0xff]
  %v499 = vld [vmem:[#allocation2 + $0x60] sm:$0xff]
  %v500 = vld [vmem:[#allocation2 + $0x68] sm:$0xff]
  %v501 = vld [vmem:[#allocation2 + $0x70] sm:$0xff]
  %v502 = vld [vmem:[#allocation2 + $0x78] sm:$0xff]
  %v503 = vld [vmem:[#allocation2 + $0x80] sm:$0xff]
  %v504 = vld [vmem:[#allocation2 + $0x88] sm:$0xff]
  %v505 = vld [vmem:[#allocation2 + $0x90] sm:$0xff]
  %v506 = vld [vmem:[#allocation2 + $0x98] sm:$0xff]
  %v507 = vld [vmem:[#allocation2 + $0xa0] sm:$0xff]
  %v508 = vld [vmem:[#allocation2 + $0xa8] sm:$0xff]
  %v509 = vld [vmem:[#allocation2 + $0xb0] sm:$0xff]
  %v510 = vld [vmem:[#allocation2 + $0xb8] sm:$0xff]
  %v511 = vld [vmem:[#allocation2 + $0xc0] sm:$0xff]
  %v512 = vld [vmem:[#allocation2 + $0xc8] sm:$0xff]
  %v513 = vld [vmem:[#allocation2 + $0xd0] sm:$0xff]
  %v514 = vld [vmem:[#allocation2 + $0xd8] sm:$0xff]
  %v515 = vld [vmem:[#allocation2 + $0xe0] sm:$0xff]
  %v516 = vld [vmem:[#allocation2 + $0xe8] sm:$0xff]
  %v517 = vld [vmem:[#allocation2 + $0xf0] sm:$0xff]
  %v518 = vld [vmem:[#allocation2 + $0xf8] sm:$0xff]
  %v519 = vld [vmem:[#allocation2 + $0x100] sm:$0xff]
  %v520 = vld [vmem:[#allocation2 + $0x108] sm:$0xff]
  %v521 = vld [vmem:[#allocation2 + $0x110] sm:$0xff]
  %v522 = vld [vmem:[#allocation2 + $0x118] sm:$0xff]
  %v523 = vld [vmem:[#allocation2 + $0x120] sm:$0xff]
  %v524 = vld [vmem:[#allocation2 + $0x128] sm:$0xff]
  %v525 = vld [vmem:[#allocation2 + $0x130] sm:$0xff]
  %v526 = vld [vmem:[#allocation2 + $0x138] sm:$0xff]
  %v527 = vld [vmem:[#allocation2 + $0x140] sm:$0xff]
  %v528 = vld [vmem:[#allocation2 + $0x148] sm:$0xff]
  %v529 = vld [vmem:[#allocation2 + $0x150] sm:$0xff]
  %v530 = vld [vmem:[#allocation2 + $0x158] sm:$0xff]
  %v531 = vld [vmem:[#allocation2 + $0x160] sm:$0xff]
  %v532 = vld [vmem:[#allocation2 + $0x168] sm:$0xff]
  %v533 = vld [vmem:[#allocation2 + $0x170] sm:$0xff]
  %v534 = vld [vmem:[#allocation2 + $0x178] sm:$0xff]
  %v535 = vld [vmem:[#allocation2 + $0x180] sm:$0xff]
  %v536 = vld [vmem:[#allocation2 + $0x188] sm:$0xff]
  %v537 = vld [vmem:[#allocation2 + $0x190] sm:$0xff]
  %v538 = vld [vmem:[#allocation2 + $0x198] sm:$0xff]
  %v539 = vld [vmem:[#allocation2 + $0x1a0] sm:$0xff]
  %v540 = vld [vmem:[#allocation2 + $0x1a8] sm:$0xff]
  %v541 = vld [vmem:[%s2] sm:$0xff]
  %543 = vset.pattern.permute.xlu0 0
  %544 = vperm.xlu0 %543, %v541
  %v545 = vpop.permute.xlu0 %544
  %v548 = vunpack.c.l.b16 %v486
  %v549 = vunpack.c.h.b16 %v486
  %v550 = vpack.c.b16 %v548, %v548
  %v551 = vpack.c.b16 %v549, %v549
  %v607 = vunpack.c.l.b16 %v487
  %v608 = vunpack.c.h.b16 %v487
  %v609 = vunpack.c.l.b16 %v488
  %v610 = vunpack.c.h.b16 %v488
  %v611 = vunpack.c.l.b16 %v489
  %v612 = vunpack.c.h.b16 %v489
  %v613 = vunpack.c.l.b16 %v490
  %v614 = vunpack.c.h.b16 %v490
  %v615 = vunpack.c.l.b16 %v491
  %v616 = vunpack.c.h.b16 %v491
  %v617 = vunpack.c.l.b16 %v492
  %v618 = vunpack.c.h.b16 %v492
  %v619 = vunpack.c.l.b16 %v493
  %v620 = vunpack.c.h.b16 %v493
  %v621 = vunpack.c.l.b16 %v494
  %v622 = vunpack.c.h.b16 %v494
  %v623 = vunpack.c.l.b16 %v495
  %v624 = vunpack.c.h.b16 %v495
  %v625 = vunpack.c.l.b16 %v496
  %v626 = vunpack.c.h.b16 %v496
  %v627 = vunpack.c.l.b16 %v497
  %v628 = vunpack.c.h.b16 %v497
  %v629 = vunpack.c.l.b16 %v498
  %v630 = vunpack.c.h.b16 %v498
  %v631 = vunpack.c.l.b16 %v499
  %v632 = vunpack.c.h.b16 %v499
  %v633 = vunpack.c.l.b16 %v500
  %v634 = vunpack.c.h.b16 %v500
  %v635 = vunpack.c.l.b16 %v501
  %v636 = vunpack.c.h.b16 %v501
  %v637 = vunpack.c.l.b16 %v502
  %v638 = vunpack.c.h.b16 %v502
  %v639 = vunpack.c.l.b16 %v503
  %v640 = vunpack.c.h.b16 %v503
  %v641 = vunpack.c.l.b16 %v504
  %v642 = vunpack.c.h.b16 %v504
  %v643 = vunpack.c.l.b16 %v505
  %v644 = vunpack.c.h.b16 %v505
  %v645 = vunpack.c.l.b16 %v506
  %v646 = vunpack.c.h.b16 %v506
  %v647 = vunpack.c.l.b16 %v507
  %v648 = vunpack.c.h.b16 %v507
  %v649 = vunpack.c.l.b16 %v508
  %v650 = vunpack.c.h.b16 %v508
  %v651 = vunpack.c.l.b16 %v509
  %v652 = vunpack.c.h.b16 %v509
  %v653 = vunpack.c.l.b16 %v510
  %v654 = vunpack.c.h.b16 %v510
  %v655 = vunpack.c.l.b16 %v511
  %v656 = vunpack.c.h.b16 %v511
  %v657 = vunpack.c.l.b16 %v512
  %v658 = vunpack.c.h.b16 %v512
  %v659 = vunpack.c.l.b16 %v513
  %v660 = vunpack.c.h.b16 %v513
  %v661 = vunpack.c.l.b16 %v514
  %v662 = vunpack.c.h.b16 %v514
  %v663 = vunpack.c.l.b16 %v515
  %v664 = vunpack.c.h.b16 %v515
  %v665 = vunpack.c.l.b16 %v516
  %v666 = vunpack.c.h.b16 %v516
  %v667 = vunpack.c.l.b16 %v517
  %v668 = vunpack.c.h.b16 %v517
  %v669 = vunpack.c.l.b16 %v518
  %v670 = vunpack.c.h.b16 %v518
  %v671 = vunpack.c.l.b16 %v519
  %v672 = vunpack.c.h.b16 %v519
  %v673 = vunpack.c.l.b16 %v520
  %v674 = vunpack.c.h.b16 %v520
  %v675 = vunpack.c.l.b16 %v521
  %v676 = vunpack.c.h.b16 %v521
  %v677 = vunpack.c.l.b16 %v522
  %v678 = vunpack.c.h.b16 %v522
  %v679 = vunpack.c.l.b16 %v523
  %v680 = vunpack.c.h.b16 %v523
  %v681 = vunpack.c.l.b16 %v524
  %v682 = vunpack.c.h.b16 %v524
  %v683 = vunpack.c.l.b16 %v525
  %v684 = vunpack.c.h.b16 %v525
  %v685 = vunpack.c.l.b16 %v526
  %v686 = vunpack.c.h.b16 %v526
  %v687 = vunpack.c.l.b16 %v527
  %v688 = vunpack.c.h.b16 %v527
  %v689 = vunpack.c.l.b16 %v528
  %v690 = vunpack.c.h.b16 %v528
  %v691 = vunpack.c.l.b16 %v529
  %v692 = vunpack.c.h.b16 %v529
  %v693 = vunpack.c.l.b16 %v530
  %v694 = vunpack.c.h.b16 %v530
  %v695 = vunpack.c.l.b16 %v531
  %v696 = vunpack.c.h.b16 %v531
  %v697 = vunpack.c.l.b16 %v532
  %v698 = vunpack.c.h.b16 %v532
  %v699 = vunpack.c.l.b16 %v533
  %v700 = vunpack.c.h.b16 %v533
  %v701 = vunpack.c.l.b16 %v534
  %v702 = vunpack.c.h.b16 %v534
  %v703 = vunpack.c.l.b16 %v535
  %v704 = vunpack.c.h.b16 %v535
  %v705 = vunpack.c.l.b16 %v536
  %v706 = vunpack.c.h.b16 %v536
  %v707 = vunpack.c.l.b16 %v537
  %v708 = vunpack.c.h.b16 %v537
  %v709 = vunpack.c.l.b16 %v538
  %v710 = vunpack.c.h.b16 %v538
  %v711 = vunpack.c.l.b16 %v539
  %v712 = vunpack.c.h.b16 %v539
  %v713 = vunpack.c.l.b16 %v540
  %v714 = vunpack.c.h.b16 %v540
  %v715 = vpack.c.b16 %v613, %v607
  %v716 = vpack.c.b16 %v614, %v608
  %v717 = vpack.c.b16 %v615, %v609
  %v718 = vpack.c.b16 %v616, %v610
  %v719 = vpack.c.b16 %v617, %v611
  %v720 = vpack.c.b16 %v618, %v612
  %v721 = vpack.c.b16 %v625, %v619
  %v722 = vpack.c.b16 %v626, %v620
  %v723 = vpack.c.b16 %v627, %v621
  %v724 = vpack.c.b16 %v628, %v622
  %v725 = vpack.c.b16 %v629, %v623
  %v726 = vpack.c.b16 %v630, %v624
  %v727 = vpack.c.b16 %v637, %v631
  %v728 = vpack.c.b16 %v638, %v632
  %v729 = vpack.c.b16 %v639, %v633
  %v730 = vpack.c.b16 %v640, %v634
  %v731 = vpack.c.b16 %v641, %v635
  %v732 = vpack.c.b16 %v642, %v636
  %v733 = vpack.c.b16 %v649, %v643
  %v734 = vpack.c.b16 %v650, %v644
  %v735 = vpack.c.b16 %v651, %v645
  %v736 = vpack.c.b16 %v652, %v646
  %v737 = vpack.c.b16 %v653, %v647
  %v738 = vpack.c.b16 %v654, %v648
  %v739 = vpack.c.b16 %v661, %v655
  %v740 = vpack.c.b16 %v662, %v656
  %v741 = vpack.c.b16 %v663, %v657
  %v742 = vpack.c.b16 %v664, %v658
  %v743 = vpack.c.b16 %v665, %v659
  %v744 = vpack.c.b16 %v666, %v660
  %v745 = vpack.c.b16 %v673, %v667
  %v746 = vpack.c.b16 %v674, %v668
  %v747 = vpack.c.b16 %v675, %v669
  %v748 = vpack.c.b16 %v676, %v670
  %v749 = vpack.c.b16 %v677, %v671
  %v750 = vpack.c.b16 %v678, %v672
  %v751 = vpack.c.b16 %v685, %v679
  %v752 = vpack.c.b16 %v686, %v680
  %v753 = vpack.c.b16 %v687, %v681
  %v754 = vpack.c.b16 %v688, %v682
  %v755 = vpack.c.b16 %v689, %v683
  %v756 = vpack.c.b16 %v690, %v684
  %v757 = vpack.c.b16 %v697, %v691
  %v758 = vpack.c.b16 %v698, %v692
  %v759 = vpack.c.b16 %v699, %v693
  %v760 = vpack.c.b16 %v700, %v694
  %v761 = vpack.c.b16 %v701, %v695
  %v762 = vpack.c.b16 %v702, %v696
  %v763 = vpack.c.b16 %v709, %v703
  %v764 = vpack.c.b16 %v710, %v704
  %v765 = vpack.c.b16 %v711, %v705
  %v766 = vpack.c.b16 %v712, %v706
  %v767 = vpack.c.b16 %v713, %v707
  %v768 = vpack.c.b16 %v714, %v708
  %vm823 = vcmask 130048
  %v825 = vsel %vm823, %v551, 0
  %827 = vmatpush.bf16.msra.mxu0 %v757
  %828 = vmatpush.bf16.msra.mxu0 %v751
  %829 = vmatpush.bf16.msra.mxu0 %v745
  %830 = vmatpush.bf16.msra.mxu0 %v739
  %831 = vmatpush.bf16.msra.mxu0 %v733
  %832 = vmatpush.bf16.msra.mxu0 %v727
  %833 = vmatpush.bf16.msra.mxu0 %v721
  %834 = vmatpush.bf16.msra.mxu0 %v715
  %835 = vmatmul.bf16.gmra.mxu0 %v550
  %v836 = vpop.f32.mrf.mxu0
  %v837 = vadd.f32 %v545, %v836
  %v838 = vpop.f32.mrf.mxu0
  %839 = vdwg.mxu0
  %840 = vmatpush.bf16.msra.mxu0 0
  %841 = vmatpush.bf16.msra.mxu0 0
  %842 = vmatpush.bf16.msra.mxu0 0
  %843 = vmatpush.bf16.msra.mxu0 0
  %844 = vmatpush.bf16.msra.mxu0 0
  %845 = vmatpush.bf16.msra.mxu0 0
  %846 = vmatpush.bf16.msra.mxu0 0
  %847 = vmatpush.bf16.msra.mxu0 %v763
  %848 = vmatmul.bf16.gmra.mxu0 %v825
  %v849 = vpop.f32.mrf.mxu0
  %v850 = vadd.f32 %v837, %v849
  %v851 = vpop.f32.mrf.mxu0
  %852 = vdwg.mxu0
  %853 = vmatpush.bf16.msra.mxu0 %v758
  %854 = vmatpush.bf16.msra.mxu0 %v752
  %855 = vmatpush.bf16.msra.mxu0 %v746
  %856 = vmatpush.bf16.msra.mxu0 %v740
  %857 = vmatpush.bf16.msra.mxu0 %v734
  %858 = vmatpush.bf16.msra.mxu0 %v728
  %859 = vmatpush.bf16.msra.mxu0 %v722
  %860 = vmatpush.bf16.msra.mxu0 %v716
  %861 = vmatmul.bf16.gmra.mxu0 %v550
  %v862 = vpop.f32.mrf.mxu0
  %v863 = vadd.f32 %v545, %v862
  %v864 = vpop.f32.mrf.mxu0
  %865 = vdwg.mxu0
  %866 = vmatpush.bf16.msra.mxu0 0
  %867 = vmatpush.bf16.msra.mxu0 0
  %868 = vmatpush.bf16.msra.mxu0 0
  %869 = vmatpush.bf16.msra.mxu0 0
  %870 = vmatpush.bf16.msra.mxu0 0
  %871 = vmatpush.bf16.msra.mxu0 0
  %872 = vmatpush.bf16.msra.mxu0 0
  %873 = vmatpush.bf16.msra.mxu0 %v764
  %874 = vmatmul.bf16.gmra.mxu0 %v825
  %v875 = vpop.f32.mrf.mxu0
  %v876 = vadd.f32 %v863, %v875
  %v877 = vpop.f32.mrf.mxu0
  %878 = vdwg.mxu0
  %879 = vmatpush.bf16.msra.mxu0 %v759
  %880 = vmatpush.bf16.msra.mxu0 %v753
  %881 = vmatpush.bf16.msra.mxu0 %v747
  %882 = vmatpush.bf16.msra.mxu0 %v741
  %883 = vmatpush.bf16.msra.mxu0 %v735
  %884 = vmatpush.bf16.msra.mxu0 %v729
  %885 = vmatpush.bf16.msra.mxu0 %v723
  %886 = vmatpush.bf16.msra.mxu0 %v717
  %887 = vmatmul.bf16.gmra.mxu0 %v550
  %v888 = vpop.f32.mrf.mxu0
  %v889 = vadd.f32 %v545, %v888
  %v890 = vpop.f32.mrf.mxu0
  %891 = vdwg.mxu0
  %892 = vmatpush.bf16.msra.mxu0 0
  %893 = vmatpush.bf16.msra.mxu0 0
  %894 = vmatpush.bf16.msra.mxu0 0
  %895 = vmatpush.bf16.msra.mxu0 0
  %896 = vmatpush.bf16.msra.mxu0 0
  %897 = vmatpush.bf16.msra.mxu0 0
  %898 = vmatpush.bf16.msra.mxu0 0
  %899 = vmatpush.bf16.msra.mxu0 %v765
  %900 = vmatmul.bf16.gmra.mxu0 %v825
  %v901 = vpop.f32.mrf.mxu0
  %v902 = vadd.f32 %v889, %v901
  %v903 = vpop.f32.mrf.mxu0
  %904 = vdwg.mxu0
  %905 = vmatpush.bf16.msra.mxu0 %v760
  %906 = vmatpush.bf16.msra.mxu0 %v754
  %907 = vmatpush.bf16.msra.mxu0 %v748
  %908 = vmatpush.bf16.msra.mxu0 %v742
  %909 = vmatpush.bf16.msra.mxu0 %v736
  %910 = vmatpush.bf16.msra.mxu0 %v730
  %911 = vmatpush.bf16.msra.mxu0 %v724
  %912 = vmatpush.bf16.msra.mxu0 %v718
  %913 = vmatmul.bf16.gmra.mxu0 %v550
  %v914 = vpop.f32.mrf.mxu0
  %v915 = vadd.f32 %v545, %v914
  %v916 = vpop.f32.mrf.mxu0
  %917 = vdwg.mxu0
  %918 = vmatpush.bf16.msra.mxu0 0
  %919 = vmatpush.bf16.msra.mxu0 0
  %920 = vmatpush.bf16.msra.mxu0 0
  %921 = vmatpush.bf16.msra.mxu0 0
  %922 = vmatpush.bf16.msra.mxu0 0
  %923 = vmatpush.bf16.msra.mxu0 0
  %924 = vmatpush.bf16.msra.mxu0 0
  %925 = vmatpush.bf16.msra.mxu0 %v766
  %926 = vmatmul.bf16.gmra.mxu0 %v825
  %v927 = vpop.f32.mrf.mxu0
  %v928 = vadd.f32 %v915, %v927
  %v929 = vpop.f32.mrf.mxu0
  %930 = vdwg.mxu0
  %931 = vmatpush.bf16.msra.mxu0 %v761
  %932 = vmatpush.bf16.msra.mxu0 %v755
  %933 = vmatpush.bf16.msra.mxu0 %v749
  %934 = vmatpush.bf16.msra.mxu0 %v743
  %935 = vmatpush.bf16.msra.mxu0 %v737
  %936 = vmatpush.bf16.msra.mxu0 %v731
  %937 = vmatpush.bf16.msra.mxu0 %v725
  %938 = vmatpush.bf16.msra.mxu0 %v719
  %939 = vmatmul.bf16.gmra.mxu0 %v550
  %v940 = vpop.f32.mrf.mxu0
  %v941 = vadd.f32 %v545, %v940
  %v942 = vpop.f32.mrf.mxu0
  %943 = vdwg.mxu0
  %944 = vmatpush.bf16.msra.mxu0 0
  %945 = vmatpush.bf16.msra.mxu0 0
  %946 = vmatpush.bf16.msra.mxu0 0
  %947 = vmatpush.bf16.msra.mxu0 0
  %948 = vmatpush.bf16.msra.mxu0 0
  %949 = vmatpush.bf16.msra.mxu0 0
  %950 = vmatpush.bf16.msra.mxu0 0
  %951 = vmatpush.bf16.msra.mxu0 %v767
  %952 = vmatmul.bf16.gmra.mxu0 %v825
  %v953 = vpop.f32.mrf.mxu0
  %v954 = vadd.f32 %v941, %v953
  %v955 = vpop.f32.mrf.mxu0
  %956 = vdwg.mxu0
  %957 = vmatpush.bf16.msra.mxu0 %v762
  %958 = vmatpush.bf16.msra.mxu0 %v756
  %959 = vmatpush.bf16.msra.mxu0 %v750
  %960 = vmatpush.bf16.msra.mxu0 %v744
  %961 = vmatpush.bf16.msra.mxu0 %v738
  %962 = vmatpush.bf16.msra.mxu0 %v732
  %963 = vmatpush.bf16.msra.mxu0 %v726
  %964 = vmatpush.bf16.msra.mxu0 %v720
  %965 = vmatmul.bf16.gmra.mxu0 %v550
  %v966 = vpop.f32.mrf.mxu0
  %v967 = vadd.f32 %v545, %v966
  %v968 = vpop.f32.mrf.mxu0
  %969 = vdwg.mxu0
  %970 = vmatpush.bf16.msra.mxu0 0
  %971 = vmatpush.bf16.msra.mxu0 0
  %972 = vmatpush.bf16.msra.mxu0 0
  %973 = vmatpush.bf16.msra.mxu0 0
  %974 = vmatpush.bf16.msra.mxu0 0
  %975 = vmatpush.bf16.msra.mxu0 0
  %976 = vmatpush.bf16.msra.mxu0 0
  %977 = vmatpush.bf16.msra.mxu0 %v768
  %978 = vmatmul.bf16.gmra.mxu0 %v825
  %v979 = vpop.f32.mrf.mxu0
  %v980 = vadd.f32 %v967, %v979
  %v981 = vpop.f32.mrf.mxu0
  %982 = vdwg.mxu0
  %vm983 = vcmp.ge.f32.partialorder %v850, 0.0
  %vm984 = vcmp.ge.f32.partialorder %v876, 0.0
  %vm985 = vcmp.ge.f32.partialorder %v902, 0.0
  %vm986 = vcmp.ge.f32.partialorder %v928, 0.0
  %vm987 = vcmp.ge.f32.partialorder %v954, 0.0
  %vm988 = vcmp.ge.f32.partialorder %v980, 0.0
  %v989 = vmul.f32 %v850, 0.2
  %v990 = vmul.f32 %v876, 0.2
  %v991 = vmul.f32 %v902, 0.2
  %v992 = vmul.f32 %v928, 0.2
  %v993 = vmul.f32 %v954, 0.2
  %v994 = vmul.f32 %v980, 0.2
  %v995 = vsel %vm983, %v850, %v989
  %v996 = vsel %vm984, %v876, %v990
  %v997 = vsel %vm985, %v902, %v991
  %v998 = vsel %vm986, %v928, %v992
  %v999 = vsel %vm987, %v954, %v993
  %v1000 = vsel %vm988, %v980, %v994
  %s1001 = smul.u32 0, 2
  %s1002 = smul.u32 %s1001, 3
  %s1003 = smul.addr %s1002, 8
  %s1004 = scalar_lea.vmem %s5, %s1003
  %1005 = vst [vmem:[%s1004] sm:$0xff] %v995
  %1006 = vst [vmem:[%s1004 + $0x8] sm:$0xff] %v996
  %1007 = vst [vmem:[%s1004 + $0x10] sm:$0xff] %v997
  %s1008 = sadd.s32 %s1001, 1
  %s1009 = smul.u32 %s1008, 3
  %s1010 = smul.addr %s1009, 8
  %s1011 = scalar_lea.vmem %s5, %s1010
  %1012 = vst [vmem:[%s1011] sm:$0xff] %v998
  %1013 = vst [vmem:[%s1011 + $0x8] sm:$0xff] %v999
  %1014 = vst [vmem:[%s1011 + $0x10] sm:$0xff] %v1000
  %p1015 = scmp.eq.s32.totalorder 0, 0
  // Predicated region
  $region22: #{conv_block_forward.1} parent=0 // pred_check
    %p1016 = pneg %p1015
  $region23: #{conv_block_forward.1} parent=0 // pred_check_branch
    %1018 = sbr.rel (%p1016) target = $region25
  $region24: #{conv_block_forward.1} parent=0 // pred_region
    %v1019 = vlaneseq
    %v1020 = vand.u32 %v1019, 127
    %v1021 = vadd.s32 %v1020, 128
    %v1022 = vadd.s32 %v1020, 256
    %vm1023 = vcmp.lt.s32.totalorder %v1020, 0
    %v1024 = vsub.s32 0, %v1020
    %v1025 = vsel %vm1023, %v1024, %v1020
    %v1026 = vand.u32 %v1025, 65535
    %v1027 = vshrl.u32 %v1025, 16
    %v1029 = vmul.u32 %v1026, 14564
    %v1030 = vmul.u32 %v1026, 58254
    %v1031 = vmul.u32 %v1027, 14564
    %v1032 = vmul.u32 %v1027, 58254
    %v1033 = vshll.u32 %v1030, 16
    %v1034 = vshrl.u32 %v1030, 16
    %v1035 = vshll.u32 %v1031, 16
    %v1036 = vshrl.u32 %v1031, 16
    %vm1037 = vc.u32 %v1029, %v1033
    %v1038 = vsel %vm1037, 1, 0
    %v1039 = vadd.s32 %v1029, %v1033
    %v1040 = vadd.s32 %v1032, %v1038
    %vm1041 = vc.u32 %v1039, %v1035
    %v1042 = vsel %vm1041, 1, 0
    %v1043 = vadd.s32 %v1039, %v1035
    %v1044 = vadd.s32 %v1040, %v1042
    %v1045 = vadd.s32 %v1044, %v1034
    %v1046 = vadd.s32 %v1045, %v1036
    %v1047 = vshrl.u32 %v1046, 4
    %v1048 = vmul.u32 %v1047, 18
    %v1049 = vsub.s32 %v1025, %v1048
    %v1050 = vsub.s32 0, %v1049
    %v1051 = vsel %vm1023, %v1050, %v1049
    %vm1052 = vcmp.lt.s32.totalorder %v1021, 0
    %v1053 = vsub.s32 0, %v1021
    %v1054 = vsel %vm1052, %v1053, %v1021
    %v1055 = vand.u32 %v1054, 65535
    %v1056 = vshrl.u32 %v1054, 16
    %v1058 = vmul.u32 %v1055, 14564
    %v1059 = vmul.u32 %v1055, 58254
    %v1060 = vmul.u32 %v1056, 14564
    %v1061 = vmul.u32 %v1056, 58254
    %v1062 = vshll.u32 %v1059, 16
    %v1063 = vshrl.u32 %v1059, 16
    %v1064 = vshll.u32 %v1060, 16
    %v1065 = vshrl.u32 %v1060, 16
    %vm1066 = vc.u32 %v1058, %v1062
    %v1067 = vsel %vm1066, 1, 0
    %v1068 = vadd.s32 %v1058, %v1062
    %v1069 = vadd.s32 %v1061, %v1067
    %vm1070 = vc.u32 %v1068, %v1064
    %v1071 = vsel %vm1070, 1, 0
    %v1072 = vadd.s32 %v1068, %v1064
    %v1073 = vadd.s32 %v1069, %v1071
    %v1074 = vadd.s32 %v1073, %v1063
    %v1075 = vadd.s32 %v1074, %v1065
    %v1076 = vshrl.u32 %v1075, 4
    %v1077 = vmul.u32 %v1076, 18
    %v1078 = vsub.s32 %v1054, %v1077
    %v1079 = vsub.s32 0, %v1078
    %v1080 = vsel %vm1052, %v1079, %v1078
    %vm1081 = vcmp.lt.s32.totalorder %v1022, 0
    %v1082 = vsub.s32 0, %v1022
    %v1083 = vsel %vm1081, %v1082, %v1022
    %v1084 = vand.u32 %v1083, 65535
    %v1085 = vshrl.u32 %v1083, 16
    %v1087 = vmul.u32 %v1084, 14564
    %v1088 = vmul.u32 %v1084, 58254
    %v1089 = vmul.u32 %v1085, 14564
    %v1090 = vmul.u32 %v1085, 58254
    %v1091 = vshll.u32 %v1088, 16
    %v1092 = vshrl.u32 %v1088, 16
    %v1093 = vshll.u32 %v1089, 16
    %v1094 = vshrl.u32 %v1089, 16
    %vm1095 = vc.u32 %v1087, %v1091
    %v1096 = vsel %vm1095, 1, 0
    %v1097 = vadd.s32 %v1087, %v1091
    %v1098 = vadd.s32 %v1090, %v1096
    %vm1099 = vc.u32 %v1097, %v1093
    %v1100 = vsel %vm1099, 1, 0
    %v1101 = vadd.s32 %v1097, %v1093
    %v1102 = vadd.s32 %v1098, %v1100
    %v1103 = vadd.s32 %v1102, %v1092
    %v1104 = vadd.s32 %v1103, %v1094
    %v1105 = vshrl.u32 %v1104, 4
    %v1106 = vmul.u32 %v1105, 18
    %v1107 = vsub.s32 %v1083, %v1106
    %v1108 = vsub.s32 0, %v1107
    %v1109 = vsel %vm1081, %v1108, %v1107
    %vm1110 = vcmp.ne.s32.totalorder %v1051, 0
    %vm1111 = vcmp.ne.s32.totalorder %v1080, 0
    %vm1112 = vcmp.ne.s32.totalorder %v1109, 0
    %vm1113 = vcmp.lt.s32.totalorder %v1051, 0
    %vm1114 = vcmp.lt.s32.totalorder %v1080, 0
    %vm1115 = vcmp.lt.s32.totalorder %v1109, 0
    %vm1116 = vmand %vm1113, %vm1110
    %vm1117 = vmand %vm1114, %vm1111
    %vm1118 = vmand %vm1115, %vm1112
    %v1119 = vadd.s32 %v1051, 18
    %v1120 = vadd.s32 %v1080, 18
    %v1121 = vadd.s32 %v1109, 18
    %v1122 = vsel %vm1116, %v1119, %v1051
    %v1123 = vsel %vm1117, %v1120, %v1080
    %v1124 = vsel %vm1118, %v1121, %v1109
    %vm1125 = vcmp.lt.s32.totalorder %v1122, 16
    %vm1126 = vcmp.lt.s32.totalorder %v1123, 16
    %vm1127 = vcmp.lt.s32.totalorder %v1124, 16
    %vm1128 = vcmp.lt.s32.totalorder %v1020, 288
    %vm1129 = vcmp.lt.s32.totalorder %v1021, 288
    %vm1130 = vcmp.lt.s32.totalorder %v1022, 288
    %vm1131 = vmand %vm1125, %vm1128
    %vm1132 = vmand %vm1126, %vm1129
    %vm1133 = vmand %vm1127, %vm1130
    %v1134 = vsel %vm1131, 1, 0
    %v1135 = vsel %vm1132, 1, 0
    %v1136 = vsel %vm1133, 1, 0
    %v1137 = vcvt.s32.f32 %v1134
    %v1138 = vcvt.s32.f32 %v1135
    %v1139 = vcvt.s32.f32 %v1136
    %v1140 = vld [vmem:[%s5] sm:$0xff]
    %v1141 = vld [vmem:[%s5 + $0x8] sm:$0xff]
    %v1142 = vld [vmem:[%s5 + $0x10] sm:$0xff]
    %v1143 = vmul.f32 %v1140, %v1137
    %v1144 = vmul.f32 %v1141, %v1138
    %v1145 = vmul.f32 %v1142, %v1139
    %v1146 = vadd.f32 %v1143, %v1144
    %v1147 = vadd.f32 %v1146, %v1145
    %1148 = vadd.xlane.f32.xlu0 %v1147
    %v1149 = vpop.xlane.xlu0 %1148
    %v1150 = vadd.f32 %v1149, 0.0
    %s1151 = scalar_lea.vmem %s5, 24
    %v1152 = vld [vmem:[%s1151] sm:$0xff]
    %v1153 = vld [vmem:[%s1151 + $0x8] sm:$0xff]
    %v1154 = vld [vmem:[%s1151 + $0x10] sm:$0xff]
    %v1155 = vmul.f32 %v1152, %v1137
    %v1156 = vmul.f32 %v1153, %v1138
    %v1157 = vmul.f32 %v1154, %v1139
    %v1158 = vadd.f32 %v1155, %v1156
    %v1159 = vadd.f32 %v1158, %v1157
    %1160 = vadd.xlane.f32.xlu0 %v1159
    %v1161 = vpop.xlane.xlu0 %1160
    %v1162 = vadd.f32 %v1150, %v1161
    %v1163 = vmul.f32 %v1162, 0.001953125
    %v1164 = vsub.f32 %v1140, %v1163
    %v1165 = vsub.f32 %v1141, %v1163
    %v1166 = vsub.f32 %v1142, %v1163
    %v1167 = vmul.f32 %v1164, %v1137
    %v1168 = vmul.f32 %v1165, %v1138
    %v1169 = vmul.f32 %v1166, %v1139
    %v1170 = vmul.f32 %v1167, %v1167
    %v1171 = vmul.f32 %v1168, %v1168
    %v1172 = vmul.f32 %v1169, %v1169
    %v1173 = vadd.f32 %v1170, %v1171
    %v1174 = vadd.f32 %v1173, %v1172
    %1175 = vadd.xlane.f32.xlu0 %v1174
    %v1176 = vpop.xlane.xlu0 %1175
    %v1177 = vadd.f32 %v1176, 0.0
    %v1178 = vsub.f32 %v1152, %v1163
    %v1179 = vsub.f32 %v1153, %v1163
    %v1180 = vsub.f32 %v1154, %v1163
    %v1181 = vmul.f32 %v1178, %v1137
    %v1182 = vmul.f32 %v1179, %v1138
    %v1183 = vmul.f32 %v1180, %v1139
    %v1184 = vmul.f32 %v1181, %v1181
    %v1185 = vmul.f32 %v1182, %v1182
    %v1186 = vmul.f32 %v1183, %v1183
    %v1187 = vadd.f32 %v1184, %v1185
    %v1188 = vadd.f32 %v1187, %v1186
    %1189 = vadd.xlane.f32.xlu0 %v1188
    %v1190 = vpop.xlane.xlu0 %1189
    %v1191 = vadd.f32 %v1177, %v1190
    %v1192 = vmul.f32 %v1191, 0.001953125
    %v1193 = vld [vmem:[%s3] sm:$0xff]
    %v1194 = vadd.f32 %v1192, 1e-05
    %v1195 = vrsqrt.pop %v1194
    %v1196 = vmul.f32 %v1195, %v1194
    %v1197 = vmul.f32 %v1196, %v1195
    %v1198 = vmul.f32 0.5, %v1197
    %v1199 = vsub.f32 1.5, %v1198
    %v1200 = vmul.f32 %v1195, %v1199
    %vm1201 = vweird.f32 %v1194
    %vm1202 = vweird.f32 %v1195
    %vm1203 = vmor %vm1201, %vm1202
    %v1204 = vsel %vm1203, %v1195, %v1200
    %v1205 = vmul.f32 %v1193, %v1204
    %v1206 = vld [vmem:[%s4] sm:$0xff]
    %v1207 = vmul.f32 %v1163, %v1205
    %v1208 = vsub.f32 %v1206, %v1207
    %1210 = vset.pattern.permute.xlu0 0
    %1211 = vperm.xlu0 %1210, %v1205
    %v1212 = vpop.permute.xlu0 %1211
    %v1214 = vmul.f32 %v1140, %v1212
    %v1215 = vmul.f32 %v1141, %v1212
    %v1216 = vmul.f32 %v1142, %v1212
    %1218 = vset.pattern.permute.xlu0 0
    %1219 = vperm.xlu0 %1218, %v1208
    %v1220 = vpop.permute.xlu0 %1219
    %v1222 = vadd.f32 %v1214, %v1220
    %v1223 = vadd.f32 %v1215, %v1220
    %v1224 = vadd.f32 %v1216, %v1220
    %1225 = vst [vmem:[%s5] sm:$0xff] %v1222
    %1226 = vst [vmem:[%s5 + $0x8] sm:$0xff] %v1223
    %1227 = vst [vmem:[%s5 + $0x10] sm:$0xff] %v1224
    %v1228 = vld [vmem:[%s1151] sm:$0xff]
    %v1229 = vld [vmem:[%s1151 + $0x8] sm:$0xff]
    %v1230 = vld [vmem:[%s1151 + $0x10] sm:$0xff]
    %v1231 = vmul.f32 %v1228, %v1212
    %v1232 = vmul.f32 %v1229, %v1212
    %v1233 = vmul.f32 %v1230, %v1212
    %v1234 = vadd.f32 %v1231, %v1220
    %v1235 = vadd.f32 %v1232, %v1220
    %v1236 = vadd.f32 %v1233, %v1220
    %1237 = vst [vmem:[%s1151] sm:$0xff] %v1234
    %1238 = vst [vmem:[%s1151 + $0x8] sm:$0xff] %v1235
    %1239 = vst [vmem:[%s1151 + $0x10] sm:$0xff] %v1236
  $region25: #{conv_block_forward.1} parent=0 // pred_fallthru
    _
  // Predicated region
  $region26: #{conv_block_forward.1} parent=0 // pred_check
    _
  $region27: #{conv_block_forward.1} parent=0 // pred_check_branch
    %1241 = sbr.rel (0) target = $region29
  $region28: #{conv_block_forward.1} parent=0 // pred_region
    _
  $region29: #{conv_block_forward.1} parent=0 // pred_fallthru
    _
  // Predicated region
  $region30: #{conv_block_forward.1} parent=0 // pred_check
    _
  $region31: #{conv_block_forward.1} parent=0 // pred_check_branch
    %1243 = sbr.rel (0) target = $region33
  $region32: #{conv_block_forward.1} parent=0 // pred_region
    _
  $region33: #{conv_block_forward.1} parent=0 // pred_fallthru
    _

</llo_original>
